<compile_context>
chip_gen: v6e
topology: v6e:2x2x1
jax: 0.10.0
libtpu: 0.0.40
codegen_flags: <defaults>
</compile_context>

<pallas_src>
import functools

import numpy as np
import jax
import jax.numpy as jnp
from jax.experimental import pallas as pl
from jax.experimental.pallas import tpu as pltpu


def _fat_lhs(x2, offs, rows):
    """Lane-concatenate the 9 shifted views of one plane -> (rows, 9*Cin) bf16."""
    return jnp.concatenate([x2[d:d + rows, :] for d in offs], axis=1)


def _stats_kernel(x_ref, w_ref, m_ref, ps_ref, *, tb, rows, F, offs):
    """Pass 1: per-block partial sum / sum-of-squares per (quadrant, channel)."""
    w = w_ref[...]                       # (9*Cin, F) bf16, resident
    mask = m_ref[...]                    # (rows, 1) f32, 1.0 on real pixels

    def body(p, carry):
        s, ss = carry
        x9 = _fat_lhs(x_ref[p], offs, rows)                       # bf16
        acc = jnp.dot(x9, w, preferred_element_type=jnp.float32)  # f32 accumulate
        am = acc * mask
        return (s + jnp.sum(am, axis=0, keepdims=True),
                ss + jnp.sum(am * acc, axis=0, keepdims=True))

    zero = jnp.zeros((1, F), jnp.float32)
    s, ss = jax.lax.fori_loop(0, tb, body, (zero, zero))
    ps_ref[0] = jnp.concatenate([s, ss], axis=0)


def _conv_bn_relu_kernel(x_ref, w_ref, ss_ref, o_ref, *, tb, rows, F, offs):
    """Pass 2: recompute conv, apply folded BN scale/shift, ReLU, store bf16."""
    w = w_ref[...]
    scale = ss_ref[0:1, :]
    shift = ss_ref[1:2, :]

    def body(p, carry):
        x9 = _fat_lhs(x_ref[p], offs, rows)
        acc = jnp.dot(x9, w, preferred_element_type=jnp.float32)
        o_ref[p] = jnp.maximum(acc * scale + shift, 0.0).astype(o_ref.dtype)
        return carry

    jax.lax.fori_loop(0, tb, body, 0)


def cbdr_3d_forward(x, weight, gamma, beta, eps=1e-5):
    """Forward of CBDR_3d (norm='batch', dropout=False, relu=0.0). NCDHW in/out."""
    N, Cin, D, H, W = x.shape
    Cout = weight.shape[1]
    Hp, Wp = H + 2, W + 2
    B = N * D
    F = 4 * Cout                       # 4 output-parity quadrants along lanes
    rows = H * Wp                      # per-plane output rows (2 junk cols per row)
    Sp = Hp * Wp + 2                   # flattened padded plane + tail for last tap
    offs = tuple(r0 * Wp + c0 for r0 in range(3) for c0 in range(3))

    # ---- planes per grid step: VMEM-byte budget; keep nblk >= 2 for v7x megacore
    plane_bytes = (Sp * Cin + rows * F) * 2            # bf16 in + bf16 out per plane
    budget = 4 << 20                                   # ~4 MiB live block (x2 buffers OK)
    tb = max(1, min(B, budget // max(1, plane_bytes)))
    if B >= 2:
        tb = min(tb, (B + 1) // 2)                     # guarantee >= 2 grid blocks
    nblk = -(-B // tb)
    Bp = nblk * tb

    # ---- XLA glue: channels-last, spatially padded, per-plane flattened, bf16
    x_cl = jnp.transpose(x, (0, 2, 3, 4, 1)).reshape(B, H, W, Cin)
    x_cl = jnp.pad(x_cl, ((0, 0), (1, 1), (1, 1), (0, 0))).reshape(B, Hp * Wp, Cin)
    x_cl = jnp.pad(x_cl, ((0, Bp - B), (0, Sp - Hp * Wp), (0, 0))).astype(jnp.bfloat16)

    # ---- fat-K weight slab: w9[t*Cin+ci, q*Cout+co], t = 3*r0+c0, q = 2*rp+cp
    w2 = weight[:, :, 0].astype(jnp.float32)           # (Cin, Cout, 4, 4)
    slabs = []
    for r0 in range(3):
        for c0 in range(3):
            cols = []
            for rp in range(2):
                for cp in range(2):
                    if (r0 - rp) in (0, 1) and (c0 - cp) in (0, 1):
                        kh, kw = 3 + rp - 2 * r0, 3 + cp - 2 * c0
                        cols.append(w2[:, :, kh, kw])
                    else:
                        cols.append(jnp.zeros((Cin, Cout), jnp.float32))
            slabs.append(jnp.concatenate(cols, axis=1))
    w9 = jnp.concatenate(slabs, axis=0).astype(jnp.bfloat16)   # (9*Cin, F) bf16

    # ---- mask of real (non-junk) output rows within a plane
    mask = (jnp.arange(rows) % Wp < W).astype(jnp.float32).reshape(rows, 1)

    cparams = pltpu.CompilerParams(dimension_semantics=("parallel",),
                                   vmem_limit_bytes=32 * 1024 * 1024)

    # ---- pass 1: BN batch statistics (per-block partials, reduced in XLA)
    partials = pl.pallas_call(
        functools.partial(_stats_kernel, tb=tb, rows=rows, F=F, offs=offs),
        out_shape=jax.ShapeDtypeStruct((nblk, 2, F), jnp.float32),
        grid_spec=pltpu.PrefetchScalarGridSpec(
            num_scalar_prefetch=0,
            grid=(nblk,),
            in_specs=[pl.BlockSpec((tb, Sp, Cin), lambda i: (i, 0, 0)),
                      pl.BlockSpec((9 * Cin, F), lambda i: (0, 0)),
                      pl.BlockSpec((rows, 1), lambda i: (0, 0))],
            out_specs=pl.BlockSpec((1, 2, F), lambda i: (i, 0, 0))),
        compiler_params=cparams,
    )(x_cl, w9, mask)

    # ---- tiny XLA: reduce partials, fold BN into per-channel scale/shift
    ps = jnp.sum(partials, axis=0).reshape(2, 4, Cout).sum(axis=1)   # (2, Cout)
    count = float(4 * B * H * W)        # N*D*(2H)*(2W) real pixels per channel
    mean = ps[0] / count
    var = jnp.maximum(ps[1] / count - mean * mean, 0.0)
    scale = gamma.astype(jnp.float32) * jax.lax.rsqrt(var + eps)
    shift = beta.astype(jnp.float32) - mean * scale
    ssh = jnp.stack([jnp.tile(scale, 4), jnp.tile(shift, 4)], axis=0)  # (2, F) f32

    # ---- pass 2: recompute conv + fused BN + ReLU, single bf16 HBM write
    out_flat = pl.pallas_call(
        functools.partial(_conv_bn_relu_kernel, tb=tb, rows=rows, F=F, offs=offs),
        out_shape=jax.ShapeDtypeStruct((Bp, rows, F), jnp.bfloat16),
        grid_spec=pltpu.PrefetchScalarGridSpec(
            num_scalar_prefetch=0,
            grid=(nblk,),
            in_specs=[pl.BlockSpec((tb, Sp, Cin), lambda i: (i, 0, 0)),
                      pl.BlockSpec((9 * Cin, F), lambda i: (0, 0)),
                      pl.BlockSpec((2, F), lambda i: (0, 0))],
            out_specs=pl.BlockSpec((tb, rows, F), lambda i: (i, 0, 0))),
        compiler_params=cparams,
    )(x_cl, w9, ssh)

    # ---- XLA glue: drop junk cols / padded planes, interleave parities, NCDHW, f32
    y = out_flat[:B].reshape(N, D, H, Wp, 2, 2, Cout)[:, :, :, :W]
    out = jnp.transpose(y, (0, 6, 1, 2, 4, 3, 5)).reshape(N, Cout, D, 2 * H, 2 * W)
    return out.astype(jnp.float32)


if __name__ == "__main__":
    key = jax.random.PRNGKey(0)
    k1, k2, k3, k4 = jax.random.split(key, 4)
    N, Cin, Cout, D, H, W = 2, 4, 8, 3, 8, 8

    x = jax.random.normal(k1, (N, Cin, D, H, W), jnp.float32)
    weight = 0.1 * jax.random.normal(k2, (Cin, Cout, 1, 4, 4), jnp.float32)
    gamma = 1.0 + 0.1 * jax.random.normal(k3, (Cout,), jnp.float32)
    beta = 0.1 * jax.random.normal(k4, (Cout,), jnp.float32)
    # TODO(synk): nn.Dropout path (dropout=True) not exercised — default is dropout=False.

    fwd = jax.jit(cbdr_3d_forward)
    out = jax.block_until_ready(fwd(x, weight, gamma, beta))

    # Pure-JAX f32 reference: ConvTranspose == lhs-dilated conv with flipped kernel,
    # then training-mode BatchNorm3d + ReLU.  The Pallas path uses bf16 storage for
    # x / weights / the final store (f32 accumulation everywhere), hence 2e-2 tol.
    eps = 1e-5
    x2 = jnp.transpose(x, (0, 2, 1, 3, 4)).reshape(N * D, Cin, H, W)
    wf = jnp.transpose(jnp.flip(weight[:, :, 0], (2, 3)), (1, 0, 2, 3))
    conv = jax.lax.conv_general_dilated(
        x2, wf, window_strides=(1, 1), padding=((2, 2), (2, 2)),
        lhs_dilation=(2, 2), dimension_numbers=('NCHW', 'OIHW', 'NCHW'),
        precision=jax.lax.Precision.HIGHEST)
    conv = jnp.transpose(conv.reshape(N, D, Cout, 2 * H, 2 * W), (0, 2, 1, 3, 4))
    mean = conv.mean(axis=(0, 2, 3, 4), keepdims=True)
    var = conv.var(axis=(0, 2, 3, 4), keepdims=True)
    g = gamma.reshape(1, Cout, 1, 1, 1)
    b = beta.reshape(1, Cout, 1, 1, 1)
    ref = jnp.maximum((conv - mean) * jax.lax.rsqrt(var + eps) * g + b, 0.0)

    assert out.shape == (N, Cout, D, 2 * H, 2 * W)
    np.testing.assert_allclose(np.asarray(out), np.asarray(ref), atol=2e-2, rtol=2e-2)
    print("KERNEL_OK")
</pallas_src>

<mosaic_0001>
module attributes {stable_mosaic.version = 11 : i64} {
  func.func @_conv_bn_relu_kernel(%arg0: i32, %arg1: memref<3x102x4xbf16, #tpu.memory_space<vmem>>, %arg2: memref<36x32xbf16, #tpu.memory_space<vmem>>, %arg3: memref<2x32xf32, #tpu.memory_space<vmem>>, %arg4: memref<3x80x32xbf16, #tpu.memory_space<vmem>>) attributes {dimension_semantics = [#tpu.dimension_semantics<parallel>], iteration_bounds = array<i64: 2>, scalar_prefetch = 0 : i64, scratch_operands = 0 : i64, tpu.core_type = #tpu.core_type<tc>, window_params = [{transform_indices = @transform_0, window_bounds = array<i64: 3, 102, 4>}, {pipeline_mode = #tpu.pipeline_mode<synchronous>, transform_indices = @transform_1, window_bounds = array<i64: 36, 32>}, {pipeline_mode = #tpu.pipeline_mode<synchronous>, transform_indices = @transform_2, window_bounds = array<i64: 2, 32>}, {transform_indices = @transform_3, window_bounds = array<i64: 3, 80, 32>}]} {
    %c0 = arith.constant 0 : index
    %c0_0 = arith.constant 0 : index
    %0 = vector.load %arg2[%c0, %c0_0] : memref<36x32xbf16, #tpu.memory_space<vmem>>, vector<36x32xbf16>
    %c0_1 = arith.constant 0 : index
    %c0_2 = arith.constant 0 : index
    %1 = vector.load %arg3[%c0_1, %c0_2] : memref<2x32xf32, #tpu.memory_space<vmem>>, vector<1x32xf32>
    %c1 = arith.constant 1 : index
    %c0_3 = arith.constant 0 : index
    %2 = vector.load %arg3[%c1, %c0_3] : memref<2x32xf32, #tpu.memory_space<vmem>>, vector<1x32xf32>
    %c0_i32 = arith.constant 0 : i32
    %c3_i32 = arith.constant 3 : i32
    %3 = arith.addi %c0_i32, %c3_i32 : i32
    %c1_i32 = arith.constant 1 : i32
    scf.for %arg5 = %c0_i32 to %3 step %c1_i32  : i32 {
      %4 = arith.index_cast %arg5 : i32 to index
      %c0_5 = arith.constant 0 : index
      %c0_6 = arith.constant 0 : index
      %5 = vector.load %arg1[%4, %c0_5, %c0_6] : memref<3x102x4xbf16, #tpu.memory_space<vmem>>, vector<1x102x4xbf16>
      %6 = vector.shape_cast %5 : vector<1x102x4xbf16> to vector<102x4xbf16>
      %7 = vector.extract_strided_slice %6 {offsets = [0, 0], sizes = [80, 4], strides = [1, 1]} : vector<102x4xbf16> to vector<80x4xbf16>
      %8 = vector.extract_strided_slice %6 {offsets = [1, 0], sizes = [80, 4], strides = [1, 1]} : vector<102x4xbf16> to vector<80x4xbf16>
      %9 = vector.extract_strided_slice %6 {offsets = [2, 0], sizes = [80, 4], strides = [1, 1]} : vector<102x4xbf16> to vector<80x4xbf16>
      %10 = vector.extract_strided_slice %6 {offsets = [10, 0], sizes = [80, 4], strides = [1, 1]} : vector<102x4xbf16> to vector<80x4xbf16>
      %11 = vector.extract_strided_slice %6 {offsets = [11, 0], sizes = [80, 4], strides = [1, 1]} : vector<102x4xbf16> to vector<80x4xbf16>
      %12 = vector.extract_strided_slice %6 {offsets = [12, 0], sizes = [80, 4], strides = [1, 1]} : vector<102x4xbf16> to vector<80x4xbf16>
      %13 = vector.extract_strided_slice %6 {offsets = [20, 0], sizes = [80, 4], strides = [1, 1]} : vector<102x4xbf16> to vector<80x4xbf16>
      %14 = vector.extract_strided_slice %6 {offsets = [21, 0], sizes = [80, 4], strides = [1, 1]} : vector<102x4xbf16> to vector<80x4xbf16>
      %15 = vector.extract_strided_slice %6 {offsets = [22, 0], sizes = [80, 4], strides = [1, 1]} : vector<102x4xbf16> to vector<80x4xbf16>
      %16 = tpu.concatenate %7, %8, %9, %10, %11, %12, %13, %14, %15 in 1 : vector<80x4xbf16>, vector<80x4xbf16>, vector<80x4xbf16>, vector<80x4xbf16>, vector<80x4xbf16>, vector<80x4xbf16>, vector<80x4xbf16>, vector<80x4xbf16>, vector<80x4xbf16> -> vector<80x36xbf16>
      %cst = arith.constant dense<0.000000e+00> : vector<80x32xf32>
      %17 = tpu.matmul %16, %0, %cst {dimension_numbers = #tpu.dot_dimension_numbers<[1], [0], [0], [1], [0, 0, 1, 1], [], []>} : vector<80x36xbf16>, vector<36x32xbf16>, vector<80x32xf32> -> vector<80x32xf32>
      %18 = vector.broadcast %1 : vector<1x32xf32> to vector<80x32xf32>
      %19 = arith.mulf %17, %18 : vector<80x32xf32>
      %20 = vector.broadcast %2 : vector<1x32xf32> to vector<80x32xf32>
      %21 = arith.addf %19, %20 : vector<80x32xf32>
      %cst_7 = arith.constant 0.000000e+00 : f32
      %22 = vector.broadcast %cst_7 : f32 to vector<80x32xf32>
      %23 = arith.maximumf %21, %22 : vector<80x32xf32>
      %24 = arith.truncf %23 : vector<80x32xf32> to vector<80x32xbf16>
      %25 = arith.index_cast %arg5 : i32 to index
      %c0_8 = arith.constant 0 : index
      %c0_9 = arith.constant 0 : index
      %26 = vector.load %arg4[%25, %c0_8, %c0_9] : memref<3x80x32xbf16, #tpu.memory_space<vmem>>, vector<1x80x32xbf16>
      %27 = vector.shape_cast %26 : vector<1x80x32xbf16> to vector<80x32xbf16>
      %28 = vector.shape_cast %24 : vector<80x32xbf16> to vector<1x80x32xbf16>
      tpu.vector_store %arg4[%25, %c0_8, %c0_9], %28 {strides = array<i32>} : memref<3x80x32xbf16, #tpu.memory_space<vmem>>, vector<1x80x32xbf16>,
    }
    %c3_i32_4 = arith.constant 3 : i32
    return
  }
  func.func @transform_0(%arg0: i32) -> (i32, i32, i32) {
    %c0_i32 = arith.constant 0 : i32
    %c0_i32_0 = arith.constant 0 : i32
    %c0_i32_1 = arith.constant 0 : i32
    return %arg0, %c0_i32, %c0_i32_0 : i32, i32, i32
  }
  func.func @transform_1(%arg0: i32) -> (i32, i32) {
    %c0_i32 = arith.constant 0 : i32
    %c0_i32_0 = arith.constant 0 : i32
    %c0_i32_1 = arith.constant 0 : i32
    return %c0_i32, %c0_i32_0 : i32, i32
  }
  func.func @transform_2(%arg0: i32) -> (i32, i32) {
    %c0_i32 = arith.constant 0 : i32
    %c0_i32_0 = arith.constant 0 : i32
    %c0_i32_1 = arith.constant 0 : i32
    return %c0_i32, %c0_i32_0 : i32, i32
  }
  func.func @transform_3(%arg0: i32) -> (i32, i32, i32) {
    %c0_i32 = arith.constant 0 : i32
    %c0_i32_0 = arith.constant 0 : i32
    %c0_i32_1 = arith.constant 0 : i32
    return %arg0, %c0_i32, %c0_i32_0 : i32, i32, i32
  }
}

module attributes {stable_mosaic.version = 11 : i64} {
  func.func @_stats_kernel(%arg0: i32, %arg1: memref<3x102x4xbf16, #tpu.memory_space<vmem>>, %arg2: memref<36x32xbf16, #tpu.memory_space<vmem>>, %arg3: memref<80x1xf32, #tpu.memory_space<vmem>>, %arg4: memref<1x2x32xf32, #tpu.memory_space<vmem>>) attributes {dimension_semantics = [#tpu.dimension_semantics<parallel>], iteration_bounds = array<i64: 2>, scalar_prefetch = 0 : i64, scratch_operands = 0 : i64, tpu.core_type = #tpu.core_type<tc>, window_params = [{transform_indices = @transform_0, window_bounds = array<i64: 3, 102, 4>}, {pipeline_mode = #tpu.pipeline_mode<synchronous>, transform_indices = @transform_1, window_bounds = array<i64: 36, 32>}, {pipeline_mode = #tpu.pipeline_mode<synchronous>, transform_indices = @transform_2, window_bounds = array<i64: 80, 1>}, {transform_indices = @transform_3, window_bounds = array<i64: 1, 2, 32>}]} {
    %c0 = arith.constant 0 : index
    %c0_0 = arith.constant 0 : index
    %0 = vector.load %arg2[%c0, %c0_0] : memref<36x32xbf16, #tpu.memory_space<vmem>>, vector<36x32xbf16>
    %c0_1 = arith.constant 0 : index
    %c0_2 = arith.constant 0 : index
    %1 = vector.load %arg3[%c0_1, %c0_2] : memref<80x1xf32, #tpu.memory_space<vmem>>, vector<80x1xf32>
    %cst = arith.constant 0.000000e+00 : f32
    %2 = vector.broadcast %cst : f32 to vector<1x32xf32>
    %c0_i32 = arith.constant 0 : i32
    %c3_i32 = arith.constant 3 : i32
    %3 = arith.addi %c0_i32, %c3_i32 : i32
    %c1_i32 = arith.constant 1 : i32
    %4:2 = scf.for %arg5 = %c0_i32 to %3 step %c1_i32 iter_args(%arg6 = %2, %arg7 = %2) -> (vector<1x32xf32>, vector<1x32xf32>)  : i32 {
      %9 = arith.index_cast %arg5 : i32 to index
      %c0_7 = arith.constant 0 : index
      %c0_8 = arith.constant 0 : index
      %10 = vector.load %arg1[%9, %c0_7, %c0_8] : memref<3x102x4xbf16, #tpu.memory_space<vmem>>, vector<1x102x4xbf16>
      %11 = vector.shape_cast %10 : vector<1x102x4xbf16> to vector<102x4xbf16>
      %12 = vector.extract_strided_slice %11 {offsets = [0, 0], sizes = [80, 4], strides = [1, 1]} : vector<102x4xbf16> to vector<80x4xbf16>
      %13 = vector.extract_strided_slice %11 {offsets = [1, 0], sizes = [80, 4], strides = [1, 1]} : vector<102x4xbf16> to vector<80x4xbf16>
      %14 = vector.extract_strided_slice %11 {offsets = [2, 0], sizes = [80, 4], strides = [1, 1]} : vector<102x4xbf16> to vector<80x4xbf16>
      %15 = vector.extract_strided_slice %11 {offsets = [10, 0], sizes = [80, 4], strides = [1, 1]} : vector<102x4xbf16> to vector<80x4xbf16>
      %16 = vector.extract_strided_slice %11 {offsets = [11, 0], sizes = [80, 4], strides = [1, 1]} : vector<102x4xbf16> to vector<80x4xbf16>
      %17 = vector.extract_strided_slice %11 {offsets = [12, 0], sizes = [80, 4], strides = [1, 1]} : vector<102x4xbf16> to vector<80x4xbf16>
      %18 = vector.extract_strided_slice %11 {offsets = [20, 0], sizes = [80, 4], strides = [1, 1]} : vector<102x4xbf16> to vector<80x4xbf16>
      %19 = vector.extract_strided_slice %11 {offsets = [21, 0], sizes = [80, 4], strides = [1, 1]} : vector<102x4xbf16> to vector<80x4xbf16>
      %20 = vector.extract_strided_slice %11 {offsets = [22, 0], sizes = [80, 4], strides = [1, 1]} : vector<102x4xbf16> to vector<80x4xbf16>
      %21 = tpu.concatenate %12, %13, %14, %15, %16, %17, %18, %19, %20 in 1 : vector<80x4xbf16>, vector<80x4xbf16>, vector<80x4xbf16>, vector<80x4xbf16>, vector<80x4xbf16>, vector<80x4xbf16>, vector<80x4xbf16>, vector<80x4xbf16>, vector<80x4xbf16> -> vector<80x36xbf16>
      %cst_9 = arith.constant dense<0.000000e+00> : vector<80x32xf32>
      %22 = tpu.matmul %21, %0, %cst_9 {dimension_numbers = #tpu.dot_dimension_numbers<[1], [0], [0], [1], [0, 0, 1, 1], [], []>} : vector<80x36xbf16>, vector<36x32xbf16>, vector<80x32xf32> -> vector<80x32xf32>
      %23 = vector.broadcast %1 : vector<80x1xf32> to vector<80x32xf32>
      %24 = arith.mulf %22, %23 : vector<80x32xf32>
      %cst_10 = arith.constant dense<0.000000e+00> : vector<32xf32>
      %25 = vector.multi_reduction <add>, %24, %cst_10 [0] : vector<80x32xf32> to vector<32xf32>
      %26 = vector.shape_cast %25 : vector<32xf32> to vector<1x32xf32>
      %27 = arith.addf %arg6, %26 : vector<1x32xf32>
      %28 = arith.mulf %24, %22 : vector<80x32xf32>
      %cst_11 = arith.constant dense<0.000000e+00> : vector<32xf32>
      %29 = vector.multi_reduction <add>, %28, %cst_11 [0] : vector<80x32xf32> to vector<32xf32>
      %30 = vector.shape_cast %29 : vector<32xf32> to vector<1x32xf32>
      %31 = arith.addf %arg7, %30 : vector<1x32xf32>
      scf.yield %27, %31 : vector<1x32xf32>, vector<1x32xf32>
    }
    %c3_i32_3 = arith.constant 3 : i32
    %5 = tpu.concatenate %4#0, %4#1 in 0 : vector<1x32xf32>, vector<1x32xf32> -> vector<2x32xf32>
    %c0_4 = arith.constant 0 : index
    %c0_5 = arith.constant 0 : index
    %c0_6 = arith.constant 0 : index
    %6 = vector.load %arg4[%c0_4, %c0_5, %c0_6] : memref<1x2x32xf32, #tpu.memory_space<vmem>>, vector<1x2x32xf32>
    %7 = vector.shape_cast %6 : vector<1x2x32xf32> to vector<2x32xf32>
    %8 = vector.shape_cast %5 : vector<2x32xf32> to vector<1x2x32xf32>
    tpu.vector_store %arg4[%c0_4, %c0_5, %c0_6], %8 {strides = array<i32>} : memref<1x2x32xf32, #tpu.memory_space<vmem>>, vector<1x2x32xf32>,
    return
  }
  func.func @transform_0(%arg0: i32) -> (i32, i32, i32) {
    %c0_i32 = arith.constant 0 : i32
    %c0_i32_0 = arith.constant 0 : i32
    %c0_i32_1 = arith.constant 0 : i32
    return %arg0, %c0_i32, %c0_i32_0 : i32, i32, i32
  }
  func.func @transform_1(%arg0: i32) -> (i32, i32) {
    %c0_i32 = arith.constant 0 : i32
    %c0_i32_0 = arith.constant 0 : i32
    %c0_i32_1 = arith.constant 0 : i32
    return %c0_i32, %c0_i32_0 : i32, i32
  }
  func.func @transform_2(%arg0: i32) -> (i32, i32) {
    %c0_i32 = arith.constant 0 : i32
    %c0_i32_0 = arith.constant 0 : i32
    %c0_i32_1 = arith.constant 0 : i32
    return %c0_i32, %c0_i32_0 : i32, i32
  }
  func.func @transform_3(%arg0: i32) -> (i32, i32, i32) {
    %c0_i32 = arith.constant 0 : i32
    %c0_i32_0 = arith.constant 0 : i32
    %c0_i32_1 = arith.constant 0 : i32
    return %arg0, %c0_i32, %c0_i32_0 : i32, i32, i32
  }
}

</mosaic_0001>

<llo_original>
// kernel: tile.17
$region0: #{tile.17}
  #allocation0 [shape = 's32[1]{0}', space=sflag, size = 0x4, scoped, tag = 'scoped memory for tile.17']
  %s0 = inlined_call_operand.vmem [shape: f32[8], index: 0, kind: input, shape index: {}]
  %s1 = inlined_call_operand.vmem [shape: f32[4,8], index: 1, kind: output, shape index: {}]
  // Predicated region
  $region2: #{tile.17} parent=0 // pred_check
    _
  $region3: #{tile.17} parent=0 // pred_check_branch
    %3 = sbr.rel (0) target = $region5
  $region4: #{tile.17} parent=0 // pred_region
    _
  $region5: #{tile.17} parent=0 // pred_fallthru
    _
  %v4 = vld [vmem:[%s0] ss:$0 sm:$0xff]
  %5 = vst [vmem:[%s1] sm:$0xf] %v4

// kernel: tile.19
$region0: #{tile.19}
  %s0 = inlined_call_operand.vmem [shape: f32[4,8], index: 0, kind: input, shape index: {}]
  %s1 = inlined_call_operand.vmem [shape: f32[1,32], index: 1, kind: output, shape index: {}]
  $region1: #{tile.19} parent=0
    #allocation0 [shape = 'u8[4096]{0}', space=vmem, size = 0x1000, scoped, tag = 'scoped mem for output reshape']
    #allocation1 [shape = 'u8[4096]{0}', space=vmem, size = 0x1000, scoped, tag = 'scoped mem for input reshape']
    %s3 = sshll.u32 1, 4
    %s4 = ssub.s32 %s3, 1
    %v5 = vld [vmem:[%s0] sm:%s4]
    %6 = vst [vmem:[#allocation1] sm:%s4] %v5
    %v7 = vld [vmem:[#allocation1] sm:$0x1]
    %vm8 = vcmask 64512
    %9 = vst.msk [vmem:[#allocation0] sm:$0x1] %vm8, %v7
    %s10 = scalar_lea.vmem [#allocation1], 3
    %v11 = vld [vmem:[%s10] sm:$0x1]
    %12 = vrot.lane.b32.xlu0 %v11, 24
    %v13 = vpop.permute.xlu0 %12
    %vm14 = vcmask 261312
    %15 = vst.msk [vmem:[#allocation0] sm:$0x1] %vm14, %v13
    %s16 = scalar_lea.vmem [#allocation1], 2
    %v17 = vld [vmem:[%s16] sm:$0x1]
    %18 = vrot.lane.b32.xlu0 %v17, 16
    %v19 = vpop.permute.xlu0 %18
    %vm20 = vcmask 195712
    %21 = vst.msk [vmem:[#allocation0] sm:$0x1] %vm20, %v19
    %s22 = scalar_lea.vmem [#allocation1], 1
    %v23 = vld [vmem:[%s22] sm:$0x1]
    %24 = vrot.lane.b32.xlu0 %v23, 8
    %v25 = vpop.permute.xlu0 %24
    %vm26 = vcmask 130112
    %27 = vst.msk [vmem:[#allocation0] sm:$0x1] %vm26, %v25
    %s29 = sshll.u32 1, 1
    %s30 = ssub.s32 %s29, 1
    %v32 = vld [vmem:[#allocation0] sm:%s30]
    %s33 = sshll.u32 1, 1
    %s34 = ssub.s32 %s33, 1
    %35 = vst [vmem:[%s1] sm:%s34] %v32

// kernel: cbdr_3d_forward.3
$region0: #{cbdr_3d_forward.3}
  #allocation0 [shape = 'u32[]', space=smem, size = 0x4, offset = 0x4, fixed_abs, tag = 'smem constant byte address 0x4 - core index']
  #allocation1 [shape = 'u32[144,128]{1,0:T(1,128)}', space=vmem, size = 0x12000, scoped, tag = 'internal scratch']
  %s0 = inlined_call_operand.vmem [shape: bf16[6,102,4], index: 0, kind: input, shape index: {}]
  %s1 = inlined_call_operand.vmem [shape: bf16[36,32], index: 1, kind: input, shape index: {}]
  %s2 = inlined_call_operand.vmem [shape: f32[2,32], index: 2, kind: input, shape index: {}]
  %s3 = inlined_call_operand.vmem [shape: bf16[6,80,32], index: 3, kind: output, shape index: {}]
  %s4 = sld [smem:[#allocation0]]
  $region52: #{cbdr_3d_forward.3} parent=0
    _
  %s6 = ssub.s32 1, %s4
  %s7 = scalar_select 0, %s6, %s4
  loop: start=0, step=1, limit=4
  $region2: #{cbdr_3d_forward.3} parent=0 // loop_pre_header
    _
  $region3: #{cbdr_3d_forward.3} parent=0 // loop_header
    %s9 = sphi 0, %s13
    %p10 = scmp.ge.s32.totalorder %s9, 4
    %s19 = sphi 0, %s21
    %s22 = sphi 0, %s19
    %s23 = sphi 0, %s22
    %s39 = sphi 0, %s23
    %s43 = sphi 0, %s43
    %s45 = sphi 0, %s43
    %s46 = sphi 0, %s45
    %s60 = sphi 0, %s46
    %s64 = sphi 0, %s64
    %s66 = sphi 0, %s64
    %s67 = sphi 0, %s66
    %s81 = sphi 0, %s67
    %s87 = sphi 0, %s89
    %s90 = sphi 0, %s87
    %s91 = sphi 0, %s90
    %s107 = sphi 0, %s91
  $region4: #{cbdr_3d_forward.3} parent=0 // loop_header_branch
    %12 = sbr.rel (%p10) target = $region8
  $region5: #{cbdr_3d_forward.3} parent=0 // loop_body
    %s14 = ssub.s32 %s9, 1
    %s15 = ssub.s32 %s9, 2
    %s16 = sadd.s32 %s9, 1
    %s17 = ssub.s32 %s9, %s16
    %p18 = scmp.eq.s32.totalorder %s17, 0
    %s20 = sadd.s32 %s19, 1
    %s21 = scalar_select %p18, %s19, %s20
    %p24 = pneg %p18
    %p25 = scmp.eq.s32.totalorder %s9, 1
    %p26 = por %p24, %p25
    %p27 = scmp.ne.s32.totalorder %s19, %s22
    %p28 = scmp.eq.s32.totalorder %s9, 0
    %p29 = por %p27, %p28
    %p30 = scmp.ne.s32.totalorder %s19, %s22
    %p31 = scmp.eq.s32.totalorder %s14, 1
    %p32 = por %p30, %p31
    %p33 = scmp.ne.s32.totalorder %s22, %s23
    %p34 = scmp.eq.s32.totalorder %s14, 0
    %p35 = por %p33, %p34
    %p36 = scmp.ne.s32.totalorder %s22, %s23
    %p37 = scmp.eq.s32.totalorder %s15, 1
    %p38 = por %p36, %p37
    %p40 = scmp.ne.s32.totalorder %s23, %s39
    %p41 = scmp.eq.s32.totalorder %s15, 0
    %p42 = por %p40, %p41
    %s44 = sadd.s32 %s43, 1
    %p47 = scmp.eq.s32.totalorder %s9, 1
    %p48 = scmp.ne.s32.totalorder %s43, %s45
    %p49 = scmp.eq.s32.totalorder %s9, 0
    %p50 = por %p48, %p49
    %p51 = scmp.ne.s32.totalorder %s43, %s45
    %p52 = scmp.eq.s32.totalorder %s14, 1
    %p53 = por %p51, %p52
    %p54 = scmp.ne.s32.totalorder %s45, %s46
    %p55 = scmp.eq.s32.totalorder %s14, 0
    %p56 = por %p54, %p55
    %p57 = scmp.ne.s32.totalorder %s45, %s46
    %p58 = scmp.eq.s32.totalorder %s15, 1
    %p59 = por %p57, %p58
    %p61 = scmp.ne.s32.totalorder %s46, %s60
    %p62 = scmp.eq.s32.totalorder %s15, 0
    %p63 = por %p61, %p62
    %s65 = sadd.s32 %s64, 1
    %p68 = scmp.eq.s32.totalorder %s9, 1
    %p69 = scmp.ne.s32.totalorder %s64, %s66
    %p70 = scmp.eq.s32.totalorder %s9, 0
    %p71 = por %p69, %p70
    %p72 = scmp.ne.s32.totalorder %s64, %s66
    %p73 = scmp.eq.s32.totalorder %s14, 1
    %p74 = por %p72, %p73
    %p75 = scmp.ne.s32.totalorder %s66, %s67
    %p76 = scmp.eq.s32.totalorder %s14, 0
    %p77 = por %p75, %p76
    %p78 = scmp.ne.s32.totalorder %s66, %s67
    %p79 = scmp.eq.s32.totalorder %s15, 1
    %p80 = por %p78, %p79
    %p82 = scmp.ne.s32.totalorder %s67, %s81
    %p83 = scmp.eq.s32.totalorder %s15, 0
    %p84 = por %p82, %p83
    %s85 = ssub.s32 %s9, %s16
    %p86 = scmp.eq.s32.totalorder %s85, 0
    %s88 = sadd.s32 %s87, 1
    %s89 = scalar_select %p86, %s87, %s88
    %p92 = pneg %p86
    %p93 = scmp.eq.s32.totalorder %s9, 1
    %p94 = por %p92, %p93
    %p95 = scmp.ne.s32.totalorder %s87, %s90
    %p96 = scmp.eq.s32.totalorder %s9, 0
    %p97 = por %p95, %p96
    %p98 = scmp.ne.s32.totalorder %s87, %s90
    %p99 = scmp.eq.s32.totalorder %s14, 1
    %p100 = por %p98, %p99
    %p101 = scmp.ne.s32.totalorder %s90, %s91
    %p102 = scmp.eq.s32.totalorder %s14, 0
    %p103 = por %p101, %p102
    %p104 = scmp.ne.s32.totalorder %s90, %s91
    %p105 = scmp.eq.s32.totalorder %s15, 1
    %p106 = por %p104, %p105
    %p108 = scmp.ne.s32.totalorder %s91, %s107
    %p109 = scmp.eq.s32.totalorder %s15, 0
    %p110 = por %p108, %p109
    %p111 = scmp.le.s32.totalorder 1, %s9
    %p112 = scmp.lt.s32.totalorder %s9, 3
    %p113 = pnand %p111, %p112
    %p114 = pneg %p113
    // Predicated region
    $region9: #{cbdr_3d_forward.3} parent=5 // pred_check
      _
    $region10: #{cbdr_3d_forward.3} parent=5 // pred_check_branch
      %116 = sbr.rel (%p113) target = $region12
    $region11: #{cbdr_3d_forward.3} parent=5 // pred_region
      %s117 = ssub.s32 %s9, 1
      // Predicated region
      $region13: #{cbdr_3d_forward.3} parent=11 // pred_check
        %p118 = pneg %p56
      $region14: #{cbdr_3d_forward.3} parent=11 // pred_check_branch
        %120 = sbr.rel (%p118) target = $region16
      $region15: #{cbdr_3d_forward.3} parent=11 // pred_region
        _
      $region16: #{cbdr_3d_forward.3} parent=11 // pred_fallthru
        _
      // Predicated region
      $region17: #{cbdr_3d_forward.3} parent=11 // pred_check
        %p121 = pneg %p77
      $region18: #{cbdr_3d_forward.3} parent=11 // pred_check_branch
        %123 = sbr.rel (%p121) target = $region20
      $region19: #{cbdr_3d_forward.3} parent=11 // pred_region
        _
      $region20: #{cbdr_3d_forward.3} parent=11 // pred_fallthru
        _
    $region12: #{cbdr_3d_forward.3} parent=5 // pred_fallthru
      _
    %p124 = scmp.lt.s32.totalorder %s9, 2
    // Predicated region
    $region21: #{cbdr_3d_forward.3} parent=5 // pred_check
      %p125 = pneg %p124
    $region22: #{cbdr_3d_forward.3} parent=5 // pred_check_branch
      %127 = sbr.rel (%p125) target = $region24
    $region23: #{cbdr_3d_forward.3} parent=5 // pred_region
      // Predicated region
      $region25: #{cbdr_3d_forward.3} parent=23 // pred_check
        %p128 = pneg %p29
      $region26: #{cbdr_3d_forward.3} parent=23 // pred_check_branch
        %130 = sbr.rel (%p128) target = $region28
      $region27: #{cbdr_3d_forward.3} parent=23 // pred_region
        %s131 = smul.u32 3, %s9
        %p132 = scmp.lt.s32.totalorder %s131, 5
        %s133 = scalar_select %p132, %s131, 5
        %s134 = smul.addr %s133, 13
        %s135 = smul.addr %s134, 4
        %s136 = scalar_lea.vmem %s0, %s135
        %s137 = smul.u32 3, %s9
      $region28: #{cbdr_3d_forward.3} parent=23 // pred_fallthru
        _
    $region24: #{cbdr_3d_forward.3} parent=5 // pred_fallthru
      _
    %p138 = scmp.le.s32.totalorder 1, %s9
    %p139 = scmp.lt.s32.totalorder %s9, 3
    %p140 = pnand %p138, %p139
    %p141 = pneg %p140
    // Predicated region
    $region29: #{cbdr_3d_forward.3} parent=5 // pred_check
      _
    $region30: #{cbdr_3d_forward.3} parent=5 // pred_check_branch
      %143 = sbr.rel (%p140) target = $region32
    $region31: #{cbdr_3d_forward.3} parent=5 // pred_region
      %s144 = ssub.s32 %s9, 1
      %s145 = smul.u32 3, %s14
      %p146 = scmp.lt.s32.totalorder %s145, 5
      %s147 = scalar_select %p146, %s145, 5
      %s148 = smul.addr %s147, 13
      %s149 = smul.addr %s148, 4
      %s150 = scalar_lea.vmem %s0, %s149
      %p151 = pneg %p35
      %p152 = pneg %p32
      %p153 = pneg %p56
      %p154 = pneg %p53
      %p155 = pneg %p77
      %p156 = pneg %p74
      %p157 = pneg %p103
      %p158 = pneg %p100
      %s159 = smul.u32 3, %s14
      %p160 = scmp.lt.s32.totalorder %s159, 5
      %s161 = scalar_select %p160, %s159, 5
      %s162 = smul.addr %s161, 10
      %s163 = smul.addr %s162, 4
      %s164 = scalar_lea.vmem %s3, %s163
      %s165 = smul.u32 3, %s14
      %p166 = scmp.lt.s32.totalorder %s165, 5
      %s167 = scalar_select %p166, %s165, 5
      %s168 = smul.addr %s167, 13
      %s169 = smul.addr %s168, 4
      %s170 = scalar_lea.vmem %s0, %s169
      %s171 = smul.u32 3, %s14
      %s172 = smul.u32 3, %s14
      %p173 = scmp.lt.s32.totalorder %s172, 5
      %s174 = scalar_select %p173, %s172, 5
      %s175 = smul.addr %s174, 10
      %s176 = smul.addr %s175, 4
      %s177 = scalar_lea.vmem %s3, %s176
      %s178 = smul.u32 3, %s14
      %v180 = vld [vmem:[%s1] sm:$0xf]
      %v181 = vld [vmem:[%s1 + $0x4] sm:$0xf]
      %v182 = vld [vmem:[%s1 + $0x8] sm:$0xf]
      %v183 = vld [vmem:[%s1 + $0xc] sm:$0xf]
      %v184 = vld [vmem:[%s1 + $0x10] sm:$0x3]
      %v185 = vld [vmem:[%s2] sm:$0x1]
      %v186 = vld [vmem:[%s2 + $0x1] sm:$0x1]
      loop: start=0, step=1, limit=3
      $region33: #{cbdr_3d_forward.3} parent=31 // loop_pre_header
        _
      $region34: #{cbdr_3d_forward.3} parent=31 // loop_header
        %s188 = sphi 0, %s192
        %p189 = scmp.ge.s32.totalorder %s188, 3
      $region35: #{cbdr_3d_forward.3} parent=31 // loop_header_branch
        %191 = sbr.rel (%p189) target = $region39
      $region36: #{cbdr_3d_forward.3} parent=31 // loop_body
        %s193 = smul.u32 %s188, 13
        %s194 = smul.addr %s193, 4
        %s195 = scalar_lea.vmem %s170, %s194
        %v196 = vld [vmem:[%s195] sm:$0xf]
        %v197 = vld [vmem:[%s195 + $0x4] sm:$0xf]
        %v198 = vld [vmem:[%s195 + $0x8] sm:$0xf]
        %v199 = vld [vmem:[%s195 + $0xc] sm:$0xf]
        %v200 = vld [vmem:[%s195 + $0x10] sm:$0xf]
        %v201 = vld [vmem:[%s195 + $0x14] sm:$0xf]
        %v202 = vld [vmem:[%s195 + $0x18] sm:$0xf]
        %v203 = vld [vmem:[%s195 + $0x1c] sm:$0xf]
        %v204 = vld [vmem:[%s195 + $0x20] sm:$0xf]
        %v205 = vld [vmem:[%s195 + $0x24] sm:$0xf]
        %v206 = vld [vmem:[%s195 + $0x28] sm:$0xf]
        %v207 = vld [vmem:[%s195 + $0x2c] sm:$0xf]
        %v208 = vld [vmem:[%s195 + $0x30] sm:$0x7]
        %v219 = vunpack.c.l.b16 %v196
        %v220 = vunpack.c.l.b16 %v197
        %v221 = vunpack.c.l.b16 %v198
        %v222 = vunpack.c.l.b16 %v199
        %v223 = vunpack.c.l.b16 %v200
        %v224 = vunpack.c.l.b16 %v201
        %v225 = vunpack.c.l.b16 %v202
        %v226 = vunpack.c.l.b16 %v203
        %v227 = vunpack.c.l.b16 %v204
        %v228 = vunpack.c.l.b16 %v205
        %v229 = vpack.c.b16 %v220, %v219
        %v230 = vpack.c.b16 %v222, %v221
        %v231 = vpack.c.b16 %v224, %v223
        %v232 = vpack.c.b16 %v226, %v225
        %v233 = vpack.c.b16 %v228, %v227
        %v235 = vunpack.c.l.b16 %v206
        %v236 = vpack.c.b16 %v235, %v235
        %vm237 = vsmask.f32 7424
        %v239 = vshrl.u32 %v229, 16
        %v241 = vshll.u32 %v229, 16
        %v243 = vrot.slane %v241, 1
        %v244 = vor.u32 %v239, %v243
        %v246 = vshll.u32 %v230, 16
        %v248 = vrot.slane %v246, 1
        %v249 = vsel %vm237, %v244, %v248
        %v250 = vshrl.u32 %v230, 16
        %v252 = vor.u32 %v250, %v248
        %v254 = vshll.u32 %v231, 16
        %v256 = vrot.slane %v254, 1
        %v257 = vsel %vm237, %v252, %v256
        %v258 = vshrl.u32 %v231, 16
        %v260 = vor.u32 %v258, %v256
        %v262 = vshll.u32 %v232, 16
        %v264 = vrot.slane %v262, 1
        %v265 = vsel %vm237, %v260, %v264
        %v266 = vshrl.u32 %v232, 16
        %v268 = vor.u32 %v266, %v264
        %v270 = vshll.u32 %v233, 16
        %v272 = vrot.slane %v270, 1
        %v273 = vsel %vm237, %v268, %v272
        %v274 = vshrl.u32 %v233, 16
        %v276 = vor.u32 %v274, %v272
        %v278 = vshll.u32 %v236, 16
        %v280 = vrot.slane %v278, 1
        %v281 = vsel %vm237, %v276, %v280
        %282 = vrot.lane.b32.xlu0 %v249, 4
        %v283 = vpop.permute.xlu0 %282
        %284 = vrot.lane.b32.xlu0 %v257, 4
        %v285 = vpop.permute.xlu0 %284
        %286 = vrot.lane.b32.xlu0 %v265, 4
        %v287 = vpop.permute.xlu0 %286
        %288 = vrot.lane.b32.xlu0 %v273, 4
        %v289 = vpop.permute.xlu0 %288
        %290 = vrot.lane.b32.xlu0 %v281, 4
        %v291 = vpop.permute.xlu0 %290
        %vm292 = vcmask 1046528
        %v293 = vrot.slane %v229, 1
        %v294 = vrot.slane %v230, 1
        %v295 = vsel %vm292, %v293, %v294
        %v296 = vrot.slane %v231, 1
        %v297 = vsel %vm292, %v294, %v296
        %v298 = vrot.slane %v232, 1
        %v299 = vsel %vm292, %v296, %v298
        %v300 = vrot.slane %v233, 1
        %v301 = vsel %vm292, %v298, %v300
        %v302 = vrot.slane %v236, 1
        %v303 = vsel %vm292, %v300, %v302
        %304 = vrot.lane.b32.xlu0 %v295, 8
        %v305 = vpop.permute.xlu0 %304
        %306 = vrot.lane.b32.xlu0 %v297, 8
        %v307 = vpop.permute.xlu0 %306
        %308 = vrot.lane.b32.xlu0 %v299, 8
        %v309 = vpop.permute.xlu0 %308
        %310 = vrot.lane.b32.xlu0 %v301, 8
        %v311 = vpop.permute.xlu0 %310
        %312 = vrot.lane.b32.xlu0 %v303, 8
        %v313 = vpop.permute.xlu0 %312
        %v315 = vunpack.c.l.b16 %v207
        %v316 = vpack.c.b16 %v221, %v220
        %v317 = vpack.c.b16 %v223, %v222
        %v318 = vpack.c.b16 %v225, %v224
        %v319 = vpack.c.b16 %v227, %v226
        %v320 = vpack.c.b16 %v235, %v228
        %v321 = vpack.c.b16 %v315, %v315
        %v322 = vrot.slane %v316, 1
        %v323 = vrot.slane %v317, 1
        %v324 = vsel %vm292, %v322, %v323
        %v325 = vrot.slane %v318, 1
        %v326 = vsel %vm292, %v323, %v325
        %v327 = vrot.slane %v319, 1
        %v328 = vsel %vm292, %v325, %v327
        %v329 = vrot.slane %v320, 1
        %v330 = vsel %vm292, %v327, %v329
        %v331 = vrot.slane %v321, 1
        %v332 = vsel %vm292, %v329, %v331
        %333 = vrot.lane.b32.xlu0 %v324, 12
        %v334 = vpop.permute.xlu0 %333
        %335 = vrot.lane.b32.xlu0 %v326, 12
        %v336 = vpop.permute.xlu0 %335
        %337 = vrot.lane.b32.xlu0 %v328, 12
        %v338 = vpop.permute.xlu0 %337
        %339 = vrot.lane.b32.xlu0 %v330, 12
        %v340 = vpop.permute.xlu0 %339
        %341 = vrot.lane.b32.xlu0 %v332, 12
        %v342 = vpop.permute.xlu0 %341
        %vm343 = vsmask.f32 6400
        %v345 = vshrl.u32 %v316, 16
        %v347 = vrot.slane %v345, 1
        %v348 = vshll.u32 %v316, 16
        %v350 = vrot.slane %v348, 2
        %v351 = vor.u32 %v347, %v350
        %v353 = vshrl.u32 %v317, 16
        %v355 = vrot.slane %v353, 1
        %v356 = vshll.u32 %v317, 16
        %v358 = vrot.slane %v356, 2
        %v359 = vor.u32 %v355, %v358
        %v360 = vsel %vm343, %v351, %v359
        %v362 = vshrl.u32 %v318, 16
        %v364 = vrot.slane %v362, 1
        %v365 = vshll.u32 %v318, 16
        %v367 = vrot.slane %v365, 2
        %v368 = vor.u32 %v364, %v367
        %v369 = vsel %vm343, %v359, %v368
        %v371 = vshrl.u32 %v319, 16
        %v373 = vrot.slane %v371, 1
        %v374 = vshll.u32 %v319, 16
        %v376 = vrot.slane %v374, 2
        %v377 = vor.u32 %v373, %v376
        %v378 = vsel %vm343, %v368, %v377
        %v380 = vshrl.u32 %v320, 16
        %v382 = vrot.slane %v380, 1
        %v383 = vshll.u32 %v320, 16
        %v385 = vrot.slane %v383, 2
        %v386 = vor.u32 %v382, %v385
        %v387 = vsel %vm343, %v377, %v386
        %v389 = vshrl.u32 %v321, 16
        %v391 = vrot.slane %v389, 1
        %v392 = vshll.u32 %v321, 16
        %v394 = vrot.slane %v392, 2
        %v395 = vor.u32 %v391, %v394
        %v396 = vsel %vm343, %v386, %v395
        %397 = vrot.lane.b32.xlu0 %v360, 16
        %v398 = vpop.permute.xlu0 %397
        %399 = vrot.lane.b32.xlu0 %v369, 16
        %v400 = vpop.permute.xlu0 %399
        %401 = vrot.lane.b32.xlu0 %v378, 16
        %v402 = vpop.permute.xlu0 %401
        %403 = vrot.lane.b32.xlu0 %v387, 16
        %v404 = vpop.permute.xlu0 %403
        %405 = vrot.lane.b32.xlu0 %v396, 16
        %v406 = vpop.permute.xlu0 %405
        %vm407 = vcmask 1045504
        %v408 = vrot.slane %v316, 2
        %v409 = vrot.slane %v317, 2
        %v410 = vsel %vm407, %v408, %v409
        %v411 = vrot.slane %v318, 2
        %v412 = vsel %vm407, %v409, %v411
        %v413 = vrot.slane %v319, 2
        %v414 = vsel %vm407, %v411, %v413
        %v415 = vrot.slane %v320, 2
        %v416 = vsel %vm407, %v413, %v415
        %v417 = vrot.slane %v321, 2
        %v418 = vsel %vm407, %v415, %v417
        %419 = vrot.lane.b32.xlu0 %v410, 20
        %v420 = vpop.permute.xlu0 %419
        %421 = vrot.lane.b32.xlu0 %v412, 20
        %v422 = vpop.permute.xlu0 %421
        %423 = vrot.lane.b32.xlu0 %v414, 20
        %v424 = vpop.permute.xlu0 %423
        %425 = vrot.lane.b32.xlu0 %v416, 20
        %v426 = vpop.permute.xlu0 %425
        %427 = vrot.lane.b32.xlu0 %v418, 20
        %v428 = vpop.permute.xlu0 %427
        %v430 = vunpack.c.l.b16 %v208
        %v431 = vpack.c.b16 %v315, %v235
        %v432 = vpack.c.b16 %v430, %v430
        %v433 = vrot.slane %v230, 2
        %v434 = vrot.slane %v231, 2
        %v435 = vsel %vm407, %v433, %v434
        %v436 = vrot.slane %v232, 2
        %v437 = vsel %vm407, %v434, %v436
        %v438 = vrot.slane %v233, 2
        %v439 = vsel %vm407, %v436, %v438
        %v440 = vrot.slane %v431, 2
        %v441 = vsel %vm407, %v438, %v440
        %v442 = vrot.slane %v432, 2
        %v443 = vsel %vm407, %v440, %v442
        %444 = vrot.lane.b32.xlu0 %v435, 24
        %v445 = vpop.permute.xlu0 %444
        %446 = vrot.lane.b32.xlu0 %v437, 24
        %v447 = vpop.permute.xlu0 %446
        %448 = vrot.lane.b32.xlu0 %v439, 24
        %v449 = vpop.permute.xlu0 %448
        %450 = vrot.lane.b32.xlu0 %v441, 24
        %v451 = vpop.permute.xlu0 %450
        %452 = vrot.lane.b32.xlu0 %v443, 24
        %v453 = vpop.permute.xlu0 %452
        %vm454 = vsmask.f32 5376
        %v455 = vrot.slane %v250, 2
        %v456 = vrot.slane %v246, 3
        %v457 = vor.u32 %v455, %v456
        %v458 = vrot.slane %v258, 2
        %v459 = vrot.slane %v254, 3
        %v460 = vor.u32 %v458, %v459
        %v461 = vsel %vm454, %v457, %v460
        %v462 = vrot.slane %v266, 2
        %v463 = vrot.slane %v262, 3
        %v464 = vor.u32 %v462, %v463
        %v465 = vsel %vm454, %v460, %v464
        %v466 = vrot.slane %v274, 2
        %v467 = vrot.slane %v270, 3
        %v468 = vor.u32 %v466, %v467
        %v469 = vsel %vm454, %v464, %v468
        %v471 = vshrl.u32 %v431, 16
        %v473 = vrot.slane %v471, 2
        %v474 = vshll.u32 %v431, 16
        %v476 = vrot.slane %v474, 3
        %v477 = vor.u32 %v473, %v476
        %v478 = vsel %vm454, %v468, %v477
        %v480 = vshrl.u32 %v432, 16
        %v482 = vrot.slane %v480, 2
        %v483 = vshll.u32 %v432, 16
        %v485 = vrot.slane %v483, 3
        %v486 = vor.u32 %v482, %v485
        %v487 = vsel %vm454, %v477, %v486
        %488 = vrot.lane.b32.xlu0 %v461, 28
        %v489 = vpop.permute.xlu0 %488
        %490 = vrot.lane.b32.xlu0 %v465, 28
        %v491 = vpop.permute.xlu0 %490
        %492 = vrot.lane.b32.xlu0 %v469, 28
        %v493 = vpop.permute.xlu0 %492
        %494 = vrot.lane.b32.xlu0 %v478, 28
        %v495 = vpop.permute.xlu0 %494
        %496 = vrot.lane.b32.xlu0 %v487, 28
        %v497 = vpop.permute.xlu0 %496
        %vm498 = vcmask 1044480
        %v499 = vrot.slane %v230, 3
        %v500 = vrot.slane %v231, 3
        %v501 = vsel %vm498, %v499, %v500
        %v502 = vrot.slane %v232, 3
        %v503 = vsel %vm498, %v500, %v502
        %v504 = vrot.slane %v233, 3
        %v505 = vsel %vm498, %v502, %v504
        %v506 = vrot.slane %v431, 3
        %v507 = vsel %vm498, %v504, %v506
        %v508 = vrot.slane %v432, 3
        %v509 = vsel %vm498, %v506, %v508
        %510 = vrot.lane.b32.xlu0 %v501, 32
        %v511 = vpop.permute.xlu0 %510
        %512 = vrot.lane.b32.xlu0 %v503, 32
        %v513 = vpop.permute.xlu0 %512
        %514 = vrot.lane.b32.xlu0 %v505, 32
        %v515 = vpop.permute.xlu0 %514
        %516 = vrot.lane.b32.xlu0 %v507, 32
        %v517 = vpop.permute.xlu0 %516
        %518 = vrot.lane.b32.xlu0 %v509, 32
        %v519 = vpop.permute.xlu0 %518
        %vm520 = vcmask 31744
        %v522 = vsel %vm520, %v229, %v283
        %v524 = vsel %vm520, %v230, %v285
        %v526 = vsel %vm520, %v231, %v287
        %v528 = vsel %vm520, %v232, %v289
        %v530 = vsel %vm520, %v233, %v291
        %vm531 = vcmask 64512
        %v533 = vsel %vm531, %v522, %v305
        %v535 = vsel %vm531, %v524, %v307
        %v537 = vsel %vm531, %v526, %v309
        %v539 = vsel %vm531, %v528, %v311
        %v541 = vsel %vm531, %v530, %v313
        %vm542 = vcmask 97280
        %v544 = vsel %vm542, %v533, %v334
        %v546 = vsel %vm542, %v535, %v336
        %v548 = vsel %vm542, %v537, %v338
        %v550 = vsel %vm542, %v539, %v340
        %v552 = vsel %vm542, %v541, %v342
        %vm553 = vcmask 130048
        %v555 = vsel %vm553, %v544, %v398
        %v557 = vsel %vm553, %v546, %v400
        %v559 = vsel %vm553, %v548, %v402
        %v561 = vsel %vm553, %v550, %v404
        %v563 = vsel %vm553, %v552, %v406
        %vm564 = vcmask 162816
        %v566 = vsel %vm564, %v555, %v420
        %v568 = vsel %vm564, %v557, %v422
        %v570 = vsel %vm564, %v559, %v424
        %v572 = vsel %vm564, %v561, %v426
        %v574 = vsel %vm564, %v563, %v428
        %vm575 = vcmask 195584
        %v577 = vsel %vm575, %v566, %v445
        %v579 = vsel %vm575, %v568, %v447
        %v581 = vsel %vm575, %v570, %v449
        %v583 = vsel %vm575, %v572, %v451
        %v585 = vsel %vm575, %v574, %v453
        %vm586 = vcmask 228352
        %v588 = vsel %vm586, %v577, %v489
        %v590 = vsel %vm586, %v579, %v491
        %v592 = vsel %vm586, %v581, %v493
        %v594 = vsel %vm586, %v583, %v495
        %v596 = vsel %vm586, %v585, %v497
        %vm597 = vcmask 261120
        %v599 = vsel %vm597, %v588, %v511
        %v601 = vsel %vm597, %v590, %v513
        %v603 = vsel %vm597, %v592, %v515
        %v605 = vsel %vm597, %v594, %v517
        %v607 = vsel %vm597, %v596, %v519
        %v613 = vunpack.c.l.b16 %v180
        %v614 = vunpack.c.l.b16 %v181
        %v615 = vunpack.c.l.b16 %v182
        %v616 = vunpack.c.l.b16 %v183
        %v617 = vunpack.c.l.b16 %v184
        %v618 = vpack.c.b16 %v614, %v613
        %v619 = vpack.c.b16 %v616, %v615
        %v620 = vpack.c.b16 %v617, %v617
        %vm623 = vcmask 293888
        %v624 = vsel %vm623, %v599, 0
        %v626 = vsel %vm623, %v601, 0
        %v628 = vsel %vm623, %v603, 0
        %v630 = vsel %vm623, %v605, 0
        %v632 = vsel %vm623, %v607, 0
        %vm634 = vcmask 1041408
        %v636 = vsel %vm634, %v620, 0
        %638 = vmatprep.subr.bf16.mxu0 0
        %639 = vmatpush1.bf16.msra.mxu0 0
        %640 = vmatprep.subr.bf16.mxu0 0
        %641 = vmatpush1.bf16.msra.mxu0 0
        %642 = vmatprep.subr.bf16.mxu0 0
        %643 = vmatpush1.bf16.msra.mxu0 0
        %644 = vmatprep.subr.bf16.mxu0 0
        %645 = vmatpush1.bf16.msra.mxu0 0
        %646 = vmatprep.subr.bf16.mxu0 0
        %647 = vmatpush1.bf16.msra.mxu0 0
        %648 = vmatprep.subr.bf16.mxu0 0
        %649 = vmatpush1.bf16.msra.mxu0 %v636
        %650 = vmatprep.subr.bf16.mxu0 0
        %651 = vmatpush1.bf16.msra.mxu0 %v619
        %652 = vmatprep.subr.bf16.mxu0 0
        %653 = vmatpush1.bf16.msra.mxu0 %v618
        %654 = vmatprep.subr.bf16.mxu0 0
        %655 = vmatpush2.bf16.msra.mxu0 0
        %656 = vmatprep.subr.bf16.mxu0 0
        %657 = vmatpush2.bf16.msra.mxu0 0
        %658 = vmatprep.subr.bf16.mxu0 0
        %659 = vmatpush2.bf16.msra.mxu0 0
        %660 = vmatprep.subr.bf16.mxu0 0
        %661 = vmatpush2.bf16.msra.mxu0 0
        %662 = vmatprep.subr.bf16.mxu0 0
        %663 = vmatpush2.bf16.msra.mxu0 0
        %664 = vmatprep.subr.bf16.mxu0 0
        %665 = vmatpush2.bf16.msra.mxu0 0
        %666 = vmatprep.subr.bf16.mxu0 0
        %667 = vmatpush2.bf16.msra.mxu0 0
        %668 = vmatprep.subr.bf16.mxu0 0
        %669 = vmatpush2.bf16.msra.mxu0 0
        %670 = vmatprep.mubr.bf16.mxu0 0
        %671 = vmatmul.mubr.bf16.gmra.mxu0 %v624
        %v672 = vpop.f32.mrf.mxu0
        %v673 = vadd.f32 0.0, %v672
        %v674 = vpop.f32.mrf.mxu0
        %v675 = vpop.f32.mrf.mxu0
        %v676 = vadd.f32 0.0, %v675
        %v677 = vpop.f32.mrf.mxu0
        %678 = vmatprep.mubr.bf16.mxu0 0
        %679 = vmatmul.mubr.bf16.gmra.mxu0 %v626
        %v680 = vpop.f32.mrf.mxu0
        %v681 = vadd.f32 0.0, %v680
        %v682 = vpop.f32.mrf.mxu0
        %v683 = vpop.f32.mrf.mxu0
        %v684 = vadd.f32 0.0, %v683
        %v685 = vpop.f32.mrf.mxu0
        %686 = vmatprep.mubr.bf16.mxu0 0
        %687 = vmatmul.mubr.bf16.gmra.mxu0 %v628
        %v688 = vpop.f32.mrf.mxu0
        %v689 = vadd.f32 0.0, %v688
        %v690 = vpop.f32.mrf.mxu0
        %v691 = vpop.f32.mrf.mxu0
        %v692 = vadd.f32 0.0, %v691
        %v693 = vpop.f32.mrf.mxu0
        %694 = vmatprep.mubr.bf16.mxu0 0
        %695 = vmatmul.mubr.bf16.gmra.mxu0 %v630
        %v696 = vpop.f32.mrf.mxu0
        %v697 = vadd.f32 0.0, %v696
        %v698 = vpop.f32.mrf.mxu0
        %v699 = vpop.f32.mrf.mxu0
        %v700 = vadd.f32 0.0, %v699
        %v701 = vpop.f32.mrf.mxu0
        %702 = vmatprep.mubr.bf16.mxu0 0
        %703 = vmatmul.mubr.bf16.gmra.mxu0 %v632
        %v704 = vpop.f32.mrf.mxu0
        %v705 = vadd.f32 0.0, %v704
        %v706 = vpop.f32.mrf.mxu0
        %v707 = vpop.f32.mrf.mxu0
        %v708 = vadd.f32 0.0, %v707
        %v709 = vpop.f32.mrf.mxu0
        %710 = vdwg.mxu0
        %v711 = vlaneseq
        %v712 = vshrl.u32 %v711, 7
        %v713 = vsub.s32 0, %v712
        %v714 = vrot.slane %v185, %v713
        %v715 = vmul.f32 %v673, %v714
        %v716 = vmul.f32 %v676, %v714
        %v717 = vmul.f32 %v681, %v714
        %v718 = vmul.f32 %v684, %v714
        %v719 = vmul.f32 %v689, %v714
        %v720 = vmul.f32 %v692, %v714
        %v721 = vmul.f32 %v697, %v714
        %v722 = vmul.f32 %v700, %v714
        %v723 = vmul.f32 %v705, %v714
        %v724 = vmul.f32 %v708, %v714
        %v725 = vlaneseq
        %v726 = vshrl.u32 %v725, 7
        %v727 = vsub.s32 0, %v726
        %v728 = vrot.slane %v186, %v727
        %v729 = vadd.f32 %v715, %v728
        %v730 = vadd.f32 %v716, %v728
        %v731 = vadd.f32 %v717, %v728
        %v732 = vadd.f32 %v718, %v728
        %v733 = vadd.f32 %v719, %v728
        %v734 = vadd.f32 %v720, %v728
        %v735 = vadd.f32 %v721, %v728
        %v736 = vadd.f32 %v722, %v728
        %v737 = vadd.f32 %v723, %v728
        %v738 = vadd.f32 %v724, %v728
        %v739 = vmax.f32 %v729, 0.0
        %v740 = vmax.f32 %v730, 0.0
        %v741 = vmax.f32 %v731, 0.0
        %v742 = vmax.f32 %v732, 0.0
        %v743 = vmax.f32 %v733, 0.0
        %v744 = vmax.f32 %v734, 0.0
        %v745 = vmax.f32 %v735, 0.0
        %v746 = vmax.f32 %v736, 0.0
        %v747 = vmax.f32 %v737, 0.0
        %v748 = vmax.f32 %v738, 0.0
        %v749 = vpack.c.bf16 %v740, %v739
        %v750 = vpack.c.bf16 %v742, %v741
        %v751 = vpack.c.bf16 %v744, %v743
        %v752 = vpack.c.bf16 %v746, %v745
        %v753 = vpack.c.bf16 %v748, %v747
        %v759 = vunpack.c.l.b16 %v749
        %v760 = vunpack.c.h.b16 %v749
        %v761 = vunpack.c.l.b16 %v750
        %v762 = vunpack.c.h.b16 %v750
        %v763 = vunpack.c.l.b16 %v751
        %v764 = vunpack.c.h.b16 %v751
        %v765 = vunpack.c.l.b16 %v752
        %v766 = vunpack.c.h.b16 %v752
        %v767 = vunpack.c.l.b16 %v753
        %v768 = vunpack.c.h.b16 %v753
        %v769 = vpack.c.b16 %v759, %v759
        %v770 = vpack.c.b16 %v760, %v760
        %v771 = vpack.c.b16 %v761, %v761
        %v772 = vpack.c.b16 %v762, %v762
        %v773 = vpack.c.b16 %v763, %v763
        %v774 = vpack.c.b16 %v764, %v764
        %v775 = vpack.c.b16 %v765, %v765
        %v776 = vpack.c.b16 %v766, %v766
        %v777 = vpack.c.b16 %v767, %v767
        %v778 = vpack.c.b16 %v768, %v768
        %s789 = smul.u32 %s188, 10
        %s790 = smul.addr %s789, 4
        %s791 = scalar_lea.vmem %s177, %s790
        %vm792 = vcmask 257024
        %793 = vst.msk [vmem:[%s791] sm:$0xf] %vm792, %v769
        %794 = vst.msk [vmem:[%s791 + $0x4] sm:$0xf] %vm792, %v770
        %795 = vst.msk [vmem:[%s791 + $0x8] sm:$0xf] %vm792, %v771
        %796 = vst.msk [vmem:[%s791 + $0xc] sm:$0xf] %vm792, %v772
        %797 = vst.msk [vmem:[%s791 + $0x10] sm:$0xf] %vm792, %v773
        %798 = vst.msk [vmem:[%s791 + $0x14] sm:$0xf] %vm792, %v774
        %799 = vst.msk [vmem:[%s791 + $0x18] sm:$0xf] %vm792, %v775
        %800 = vst.msk [vmem:[%s791 + $0x1c] sm:$0xf] %vm792, %v776
        %801 = vst.msk [vmem:[%s791 + $0x20] sm:$0xf] %vm792, %v777
        %802 = vst.msk [vmem:[%s791 + $0x24] sm:$0xf] %vm792, %v778
      $region37: #{cbdr_3d_forward.3} parent=31 // loop_footer
        %s192 = sadd.s32 1, %s188
      $region38: #{cbdr_3d_forward.3} parent=31 // loop_footer_branch
        %187 = sbr.rel target = $region34
      $region39: #{cbdr_3d_forward.3} parent=31 // loop_exit
        _
      %s803 = smul.u32 3, %s14
      %p804 = scmp.lt.s32.totalorder %s803, 5
      %s805 = scalar_select %p804, %s803, 5
      %s806 = smul.addr %s805, 10
      %s807 = smul.addr %s806, 4
      %s808 = scalar_lea.vmem %s3, %s807
      // Predicated region
      $region40: #{cbdr_3d_forward.3} parent=31 // pred_check
        %p809 = pneg %p100
      $region41: #{cbdr_3d_forward.3} parent=31 // pred_check_branch
        %811 = sbr.rel (%p809) target = $region43
      $region42: #{cbdr_3d_forward.3} parent=31 // pred_region
        %s812 = smul.u32 3, %s14
      $region43: #{cbdr_3d_forward.3} parent=31 // pred_fallthru
        _
    $region32: #{cbdr_3d_forward.3} parent=5 // pred_fallthru
      _
    %p813 = scmp.le.s32.totalorder 2, %s9
    // Predicated region
    $region44: #{cbdr_3d_forward.3} parent=5 // pred_check
      %p814 = pneg %p813
    $region45: #{cbdr_3d_forward.3} parent=5 // pred_check_branch
      %816 = sbr.rel (%p814) target = $region47
    $region46: #{cbdr_3d_forward.3} parent=5 // pred_region
      %s817 = ssub.s32 %s9, 2
      // Predicated region
      $region48: #{cbdr_3d_forward.3} parent=46 // pred_check
        %p818 = pneg %p106
      $region49: #{cbdr_3d_forward.3} parent=46 // pred_check_branch
        %820 = sbr.rel (%p818) target = $region51
      $region50: #{cbdr_3d_forward.3} parent=46 // pred_region
        %s821 = smul.u32 3, %s15
        %p822 = scmp.lt.s32.totalorder %s821, 5
        %s823 = scalar_select %p822, %s821, 5
        %s824 = smul.addr %s823, 10
        %s825 = smul.addr %s824, 4
        %s826 = scalar_lea.vmem %s3, %s825
      $region51: #{cbdr_3d_forward.3} parent=46 // pred_fallthru
        _
    $region47: #{cbdr_3d_forward.3} parent=5 // pred_fallthru
      _
  $region6: #{cbdr_3d_forward.3} parent=0 // loop_footer
    %s13 = sadd.s32 1, %s9
  $region7: #{cbdr_3d_forward.3} parent=0 // loop_footer_branch
    %8 = sbr.rel target = $region3
  $region8: #{cbdr_3d_forward.3} parent=0 // loop_exit
    _

// kernel: cbdr_3d_forward.2
$region0: #{cbdr_3d_forward.2}
  #allocation0 [shape = 'u32[]', space=smem, size = 0x4, offset = 0x4, fixed_abs, tag = 'smem constant byte address 0x4 - core index']
  #allocation1 [shape = 'u32[144,128]{1,0:T(1,128)}', space=vmem, size = 0x12000, scoped, tag = 'internal scratch']
  %s0 = inlined_call_operand.vmem [shape: bf16[6,102,4], index: 0, kind: input, shape index: {}]
  %s1 = inlined_call_operand.vmem [shape: bf16[36,32], index: 1, kind: input, shape index: {}]
  %s2 = inlined_call_operand.vmem [shape: f32[80,1], index: 2, kind: input, shape index: {}]
  %s3 = inlined_call_operand.vmem [shape: f32[2,2,32], index: 3, kind: output, shape index: {}]
  %s4 = sld [smem:[#allocation0]]
  $region52: #{cbdr_3d_forward.2} parent=0
    _
  %s6 = ssub.s32 1, %s4
  %s7 = scalar_select 0, %s6, %s4
  loop: start=0, step=1, limit=4
  $region2: #{cbdr_3d_forward.2} parent=0 // loop_pre_header
    _
  $region3: #{cbdr_3d_forward.2} parent=0 // loop_header
    %s9 = sphi 0, %s13
    %p10 = scmp.ge.s32.totalorder %s9, 4
    %s19 = sphi 0, %s21
    %s22 = sphi 0, %s19
    %s23 = sphi 0, %s22
    %s39 = sphi 0, %s23
    %s43 = sphi 0, %s43
    %s45 = sphi 0, %s43
    %s46 = sphi 0, %s45
    %s60 = sphi 0, %s46
    %s64 = sphi 0, %s64
    %s66 = sphi 0, %s64
    %s67 = sphi 0, %s66
    %s81 = sphi 0, %s67
    %s87 = sphi 0, %s89
    %s90 = sphi 0, %s87
    %s91 = sphi 0, %s90
    %s107 = sphi 0, %s91
  $region4: #{cbdr_3d_forward.2} parent=0 // loop_header_branch
    %12 = sbr.rel (%p10) target = $region8
  $region5: #{cbdr_3d_forward.2} parent=0 // loop_body
    %s14 = ssub.s32 %s9, 1
    %s15 = ssub.s32 %s9, 2
    %s16 = sadd.s32 %s9, 1
    %s17 = ssub.s32 %s9, %s16
    %p18 = scmp.eq.s32.totalorder %s17, 0
    %s20 = sadd.s32 %s19, 1
    %s21 = scalar_select %p18, %s19, %s20
    %p24 = pneg %p18
    %p25 = scmp.eq.s32.totalorder %s9, 1
    %p26 = por %p24, %p25
    %p27 = scmp.ne.s32.totalorder %s19, %s22
    %p28 = scmp.eq.s32.totalorder %s9, 0
    %p29 = por %p27, %p28
    %p30 = scmp.ne.s32.totalorder %s19, %s22
    %p31 = scmp.eq.s32.totalorder %s14, 1
    %p32 = por %p30, %p31
    %p33 = scmp.ne.s32.totalorder %s22, %s23
    %p34 = scmp.eq.s32.totalorder %s14, 0
    %p35 = por %p33, %p34
    %p36 = scmp.ne.s32.totalorder %s22, %s23
    %p37 = scmp.eq.s32.totalorder %s15, 1
    %p38 = por %p36, %p37
    %p40 = scmp.ne.s32.totalorder %s23, %s39
    %p41 = scmp.eq.s32.totalorder %s15, 0
    %p42 = por %p40, %p41
    %s44 = sadd.s32 %s43, 1
    %p47 = scmp.eq.s32.totalorder %s9, 1
    %p48 = scmp.ne.s32.totalorder %s43, %s45
    %p49 = scmp.eq.s32.totalorder %s9, 0
    %p50 = por %p48, %p49
    %p51 = scmp.ne.s32.totalorder %s43, %s45
    %p52 = scmp.eq.s32.totalorder %s14, 1
    %p53 = por %p51, %p52
    %p54 = scmp.ne.s32.totalorder %s45, %s46
    %p55 = scmp.eq.s32.totalorder %s14, 0
    %p56 = por %p54, %p55
    %p57 = scmp.ne.s32.totalorder %s45, %s46
    %p58 = scmp.eq.s32.totalorder %s15, 1
    %p59 = por %p57, %p58
    %p61 = scmp.ne.s32.totalorder %s46, %s60
    %p62 = scmp.eq.s32.totalorder %s15, 0
    %p63 = por %p61, %p62
    %s65 = sadd.s32 %s64, 1
    %p68 = scmp.eq.s32.totalorder %s9, 1
    %p69 = scmp.ne.s32.totalorder %s64, %s66
    %p70 = scmp.eq.s32.totalorder %s9, 0
    %p71 = por %p69, %p70
    %p72 = scmp.ne.s32.totalorder %s64, %s66
    %p73 = scmp.eq.s32.totalorder %s14, 1
    %p74 = por %p72, %p73
    %p75 = scmp.ne.s32.totalorder %s66, %s67
    %p76 = scmp.eq.s32.totalorder %s14, 0
    %p77 = por %p75, %p76
    %p78 = scmp.ne.s32.totalorder %s66, %s67
    %p79 = scmp.eq.s32.totalorder %s15, 1
    %p80 = por %p78, %p79
    %p82 = scmp.ne.s32.totalorder %s67, %s81
    %p83 = scmp.eq.s32.totalorder %s15, 0
    %p84 = por %p82, %p83
    %s85 = ssub.s32 %s9, %s16
    %p86 = scmp.eq.s32.totalorder %s85, 0
    %s88 = sadd.s32 %s87, 1
    %s89 = scalar_select %p86, %s87, %s88
    %p92 = pneg %p86
    %p93 = scmp.eq.s32.totalorder %s9, 1
    %p94 = por %p92, %p93
    %p95 = scmp.ne.s32.totalorder %s87, %s90
    %p96 = scmp.eq.s32.totalorder %s9, 0
    %p97 = por %p95, %p96
    %p98 = scmp.ne.s32.totalorder %s87, %s90
    %p99 = scmp.eq.s32.totalorder %s14, 1
    %p100 = por %p98, %p99
    %p101 = scmp.ne.s32.totalorder %s90, %s91
    %p102 = scmp.eq.s32.totalorder %s14, 0
    %p103 = por %p101, %p102
    %p104 = scmp.ne.s32.totalorder %s90, %s91
    %p105 = scmp.eq.s32.totalorder %s15, 1
    %p106 = por %p104, %p105
    %p108 = scmp.ne.s32.totalorder %s91, %s107
    %p109 = scmp.eq.s32.totalorder %s15, 0
    %p110 = por %p108, %p109
    %p111 = scmp.le.s32.totalorder 1, %s9
    %p112 = scmp.lt.s32.totalorder %s9, 3
    %p113 = pnand %p111, %p112
    %p114 = pneg %p113
    // Predicated region
    $region9: #{cbdr_3d_forward.2} parent=5 // pred_check
      _
    $region10: #{cbdr_3d_forward.2} parent=5 // pred_check_branch
      %116 = sbr.rel (%p113) target = $region12
    $region11: #{cbdr_3d_forward.2} parent=5 // pred_region
      %s117 = ssub.s32 %s9, 1
      // Predicated region
      $region13: #{cbdr_3d_forward.2} parent=11 // pred_check
        %p118 = pneg %p56
      $region14: #{cbdr_3d_forward.2} parent=11 // pred_check_branch
        %120 = sbr.rel (%p118) target = $region16
      $region15: #{cbdr_3d_forward.2} parent=11 // pred_region
        _
      $region16: #{cbdr_3d_forward.2} parent=11 // pred_fallthru
        _
      // Predicated region
      $region17: #{cbdr_3d_forward.2} parent=11 // pred_check
        %p121 = pneg %p77
      $region18: #{cbdr_3d_forward.2} parent=11 // pred_check_branch
        %123 = sbr.rel (%p121) target = $region20
      $region19: #{cbdr_3d_forward.2} parent=11 // pred_region
        _
      $region20: #{cbdr_3d_forward.2} parent=11 // pred_fallthru
        _
    $region12: #{cbdr_3d_forward.2} parent=5 // pred_fallthru
      _
    %p124 = scmp.lt.s32.totalorder %s9, 2
    // Predicated region
    $region21: #{cbdr_3d_forward.2} parent=5 // pred_check
      %p125 = pneg %p124
    $region22: #{cbdr_3d_forward.2} parent=5 // pred_check_branch
      %127 = sbr.rel (%p125) target = $region24
    $region23: #{cbdr_3d_forward.2} parent=5 // pred_region
      // Predicated region
      $region25: #{cbdr_3d_forward.2} parent=23 // pred_check
        %p128 = pneg %p29
      $region26: #{cbdr_3d_forward.2} parent=23 // pred_check_branch
        %130 = sbr.rel (%p128) target = $region28
      $region27: #{cbdr_3d_forward.2} parent=23 // pred_region
        %s131 = smul.u32 3, %s9
        %p132 = scmp.lt.s32.totalorder %s131, 5
        %s133 = scalar_select %p132, %s131, 5
        %s134 = smul.addr %s133, 13
        %s135 = smul.addr %s134, 4
        %s136 = scalar_lea.vmem %s0, %s135
        %s137 = smul.u32 3, %s9
      $region28: #{cbdr_3d_forward.2} parent=23 // pred_fallthru
        _
    $region24: #{cbdr_3d_forward.2} parent=5 // pred_fallthru
      _
    %p138 = scmp.le.s32.totalorder 1, %s9
    %p139 = scmp.lt.s32.totalorder %s9, 3
    %p140 = pnand %p138, %p139
    %p141 = pneg %p140
    // Predicated region
    $region29: #{cbdr_3d_forward.2} parent=5 // pred_check
      _
    $region30: #{cbdr_3d_forward.2} parent=5 // pred_check_branch
      %143 = sbr.rel (%p140) target = $region32
    $region31: #{cbdr_3d_forward.2} parent=5 // pred_region
      %s144 = ssub.s32 %s9, 1
      %s145 = smul.u32 3, %s14
      %p146 = scmp.lt.s32.totalorder %s145, 5
      %s147 = scalar_select %p146, %s145, 5
      %s148 = smul.addr %s147, 13
      %s149 = smul.addr %s148, 4
      %s150 = scalar_lea.vmem %s0, %s149
      %p151 = pneg %p35
      %p152 = pneg %p32
      %p153 = pneg %p56
      %p154 = pneg %p53
      %p155 = pneg %p77
      %p156 = pneg %p74
      %p157 = pneg %p103
      %p158 = pneg %p100
      %p159 = scmp.lt.s32.totalorder %s14, 1
      %s160 = scalar_select %p159, %s14, 1
      %s161 = smul.addr %s160, 2
      %s162 = scalar_lea.vmem %s3, %s161
      %s163 = smul.u32 3, %s14
      %p164 = scmp.lt.s32.totalorder %s163, 5
      %s165 = scalar_select %p164, %s163, 5
      %s166 = smul.addr %s165, 13
      %s167 = smul.addr %s166, 4
      %s168 = scalar_lea.vmem %s0, %s167
      %s169 = smul.u32 3, %s14
      %p170 = scmp.lt.s32.totalorder %s14, 1
      %s171 = scalar_select %p170, %s14, 1
      %s172 = smul.addr %s171, 2
      %s173 = scalar_lea.vmem %s3, %s172
      %v175 = vld [vmem:[%s1] sm:$0xf]
      %v176 = vld [vmem:[%s1 + $0x4] sm:$0xf]
      %v177 = vld [vmem:[%s1 + $0x8] sm:$0xf]
      %v178 = vld [vmem:[%s1 + $0xc] sm:$0xf]
      %v179 = vld [vmem:[%s1 + $0x10] sm:$0x3]
      %v180 = vld [vmem:[%s2] sm:$0xff]
      %v181 = vld [vmem:[%s2 + $0x8] sm:$0xff]
      %v182 = vld [vmem:[%s2 + $0x10] sm:$0xff]
      %v183 = vld [vmem:[%s2 + $0x18] sm:$0xff]
      %v184 = vld [vmem:[%s2 + $0x20] sm:$0xff]
      %v185 = vld [vmem:[%s2 + $0x28] sm:$0xff]
      %v186 = vld [vmem:[%s2 + $0x30] sm:$0xff]
      %v187 = vld [vmem:[%s2 + $0x38] sm:$0xff]
      %v188 = vld [vmem:[%s2 + $0x40] sm:$0xff]
      %v189 = vld [vmem:[%s2 + $0x48] sm:$0xff]
      loop: start=0, step=1, limit=3
      $region33: #{cbdr_3d_forward.2} parent=31 // loop_pre_header
        _
      $region34: #{cbdr_3d_forward.2} parent=31 // loop_header
        %s191 = sphi 0, %s195
        %p192 = scmp.ge.s32.totalorder %s191, 3
        %v196 = vphi 0.0, %v801
        %v197 = vphi 0.0, %v837
      $region35: #{cbdr_3d_forward.2} parent=31 // loop_header_branch
        %194 = sbr.rel (%p192) target = $region39
      $region36: #{cbdr_3d_forward.2} parent=31 // loop_body
        %s198 = smul.u32 %s191, 13
        %s199 = smul.addr %s198, 4
        %s200 = scalar_lea.vmem %s168, %s199
        %v201 = vld [vmem:[%s200] sm:$0xf]
        %v202 = vld [vmem:[%s200 + $0x4] sm:$0xf]
        %v203 = vld [vmem:[%s200 + $0x8] sm:$0xf]
        %v204 = vld [vmem:[%s200 + $0xc] sm:$0xf]
        %v205 = vld [vmem:[%s200 + $0x10] sm:$0xf]
        %v206 = vld [vmem:[%s200 + $0x14] sm:$0xf]
        %v207 = vld [vmem:[%s200 + $0x18] sm:$0xf]
        %v208 = vld [vmem:[%s200 + $0x1c] sm:$0xf]
        %v209 = vld [vmem:[%s200 + $0x20] sm:$0xf]
        %v210 = vld [vmem:[%s200 + $0x24] sm:$0xf]
        %v211 = vld [vmem:[%s200 + $0x28] sm:$0xf]
        %v212 = vld [vmem:[%s200 + $0x2c] sm:$0xf]
        %v213 = vld [vmem:[%s200 + $0x30] sm:$0x7]
        %v224 = vunpack.c.l.b16 %v201
        %v225 = vunpack.c.l.b16 %v202
        %v226 = vunpack.c.l.b16 %v203
        %v227 = vunpack.c.l.b16 %v204
        %v228 = vunpack.c.l.b16 %v205
        %v229 = vunpack.c.l.b16 %v206
        %v230 = vunpack.c.l.b16 %v207
        %v231 = vunpack.c.l.b16 %v208
        %v232 = vunpack.c.l.b16 %v209
        %v233 = vunpack.c.l.b16 %v210
        %v234 = vpack.c.b16 %v225, %v224
        %v235 = vpack.c.b16 %v227, %v226
        %v236 = vpack.c.b16 %v229, %v228
        %v237 = vpack.c.b16 %v231, %v230
        %v238 = vpack.c.b16 %v233, %v232
        %v240 = vunpack.c.l.b16 %v211
        %v241 = vpack.c.b16 %v240, %v240
        %vm242 = vsmask.f32 7424
        %v244 = vshrl.u32 %v234, 16
        %v246 = vshll.u32 %v234, 16
        %v248 = vrot.slane %v246, 1
        %v249 = vor.u32 %v244, %v248
        %v251 = vshll.u32 %v235, 16
        %v253 = vrot.slane %v251, 1
        %v254 = vsel %vm242, %v249, %v253
        %v255 = vshrl.u32 %v235, 16
        %v257 = vor.u32 %v255, %v253
        %v259 = vshll.u32 %v236, 16
        %v261 = vrot.slane %v259, 1
        %v262 = vsel %vm242, %v257, %v261
        %v263 = vshrl.u32 %v236, 16
        %v265 = vor.u32 %v263, %v261
        %v267 = vshll.u32 %v237, 16
        %v269 = vrot.slane %v267, 1
        %v270 = vsel %vm242, %v265, %v269
        %v271 = vshrl.u32 %v237, 16
        %v273 = vor.u32 %v271, %v269
        %v275 = vshll.u32 %v238, 16
        %v277 = vrot.slane %v275, 1
        %v278 = vsel %vm242, %v273, %v277
        %v279 = vshrl.u32 %v238, 16
        %v281 = vor.u32 %v279, %v277
        %v283 = vshll.u32 %v241, 16
        %v285 = vrot.slane %v283, 1
        %v286 = vsel %vm242, %v281, %v285
        %287 = vrot.lane.b32.xlu0 %v254, 4
        %v288 = vpop.permute.xlu0 %287
        %289 = vrot.lane.b32.xlu0 %v262, 4
        %v290 = vpop.permute.xlu0 %289
        %291 = vrot.lane.b32.xlu0 %v270, 4
        %v292 = vpop.permute.xlu0 %291
        %293 = vrot.lane.b32.xlu0 %v278, 4
        %v294 = vpop.permute.xlu0 %293
        %295 = vrot.lane.b32.xlu0 %v286, 4
        %v296 = vpop.permute.xlu0 %295
        %vm297 = vcmask 1046528
        %v298 = vrot.slane %v234, 1
        %v299 = vrot.slane %v235, 1
        %v300 = vsel %vm297, %v298, %v299
        %v301 = vrot.slane %v236, 1
        %v302 = vsel %vm297, %v299, %v301
        %v303 = vrot.slane %v237, 1
        %v304 = vsel %vm297, %v301, %v303
        %v305 = vrot.slane %v238, 1
        %v306 = vsel %vm297, %v303, %v305
        %v307 = vrot.slane %v241, 1
        %v308 = vsel %vm297, %v305, %v307
        %309 = vrot.lane.b32.xlu0 %v300, 8
        %v310 = vpop.permute.xlu0 %309
        %311 = vrot.lane.b32.xlu0 %v302, 8
        %v312 = vpop.permute.xlu0 %311
        %313 = vrot.lane.b32.xlu0 %v304, 8
        %v314 = vpop.permute.xlu0 %313
        %315 = vrot.lane.b32.xlu0 %v306, 8
        %v316 = vpop.permute.xlu0 %315
        %317 = vrot.lane.b32.xlu0 %v308, 8
        %v318 = vpop.permute.xlu0 %317
        %v320 = vunpack.c.l.b16 %v212
        %v321 = vpack.c.b16 %v226, %v225
        %v322 = vpack.c.b16 %v228, %v227
        %v323 = vpack.c.b16 %v230, %v229
        %v324 = vpack.c.b16 %v232, %v231
        %v325 = vpack.c.b16 %v240, %v233
        %v326 = vpack.c.b16 %v320, %v320
        %v327 = vrot.slane %v321, 1
        %v328 = vrot.slane %v322, 1
        %v329 = vsel %vm297, %v327, %v328
        %v330 = vrot.slane %v323, 1
        %v331 = vsel %vm297, %v328, %v330
        %v332 = vrot.slane %v324, 1
        %v333 = vsel %vm297, %v330, %v332
        %v334 = vrot.slane %v325, 1
        %v335 = vsel %vm297, %v332, %v334
        %v336 = vrot.slane %v326, 1
        %v337 = vsel %vm297, %v334, %v336
        %338 = vrot.lane.b32.xlu0 %v329, 12
        %v339 = vpop.permute.xlu0 %338
        %340 = vrot.lane.b32.xlu0 %v331, 12
        %v341 = vpop.permute.xlu0 %340
        %342 = vrot.lane.b32.xlu0 %v333, 12
        %v343 = vpop.permute.xlu0 %342
        %344 = vrot.lane.b32.xlu0 %v335, 12
        %v345 = vpop.permute.xlu0 %344
        %346 = vrot.lane.b32.xlu0 %v337, 12
        %v347 = vpop.permute.xlu0 %346
        %vm348 = vsmask.f32 6400
        %v350 = vshrl.u32 %v321, 16
        %v352 = vrot.slane %v350, 1
        %v353 = vshll.u32 %v321, 16
        %v355 = vrot.slane %v353, 2
        %v356 = vor.u32 %v352, %v355
        %v358 = vshrl.u32 %v322, 16
        %v360 = vrot.slane %v358, 1
        %v361 = vshll.u32 %v322, 16
        %v363 = vrot.slane %v361, 2
        %v364 = vor.u32 %v360, %v363
        %v365 = vsel %vm348, %v356, %v364
        %v367 = vshrl.u32 %v323, 16
        %v369 = vrot.slane %v367, 1
        %v370 = vshll.u32 %v323, 16
        %v372 = vrot.slane %v370, 2
        %v373 = vor.u32 %v369, %v372
        %v374 = vsel %vm348, %v364, %v373
        %v376 = vshrl.u32 %v324, 16
        %v378 = vrot.slane %v376, 1
        %v379 = vshll.u32 %v324, 16
        %v381 = vrot.slane %v379, 2
        %v382 = vor.u32 %v378, %v381
        %v383 = vsel %vm348, %v373, %v382
        %v385 = vshrl.u32 %v325, 16
        %v387 = vrot.slane %v385, 1
        %v388 = vshll.u32 %v325, 16
        %v390 = vrot.slane %v388, 2
        %v391 = vor.u32 %v387, %v390
        %v392 = vsel %vm348, %v382, %v391
        %v394 = vshrl.u32 %v326, 16
        %v396 = vrot.slane %v394, 1
        %v397 = vshll.u32 %v326, 16
        %v399 = vrot.slane %v397, 2
        %v400 = vor.u32 %v396, %v399
        %v401 = vsel %vm348, %v391, %v400
        %402 = vrot.lane.b32.xlu0 %v365, 16
        %v403 = vpop.permute.xlu0 %402
        %404 = vrot.lane.b32.xlu0 %v374, 16
        %v405 = vpop.permute.xlu0 %404
        %406 = vrot.lane.b32.xlu0 %v383, 16
        %v407 = vpop.permute.xlu0 %406
        %408 = vrot.lane.b32.xlu0 %v392, 16
        %v409 = vpop.permute.xlu0 %408
        %410 = vrot.lane.b32.xlu0 %v401, 16
        %v411 = vpop.permute.xlu0 %410
        %vm412 = vcmask 1045504
        %v413 = vrot.slane %v321, 2
        %v414 = vrot.slane %v322, 2
        %v415 = vsel %vm412, %v413, %v414
        %v416 = vrot.slane %v323, 2
        %v417 = vsel %vm412, %v414, %v416
        %v418 = vrot.slane %v324, 2
        %v419 = vsel %vm412, %v416, %v418
        %v420 = vrot.slane %v325, 2
        %v421 = vsel %vm412, %v418, %v420
        %v422 = vrot.slane %v326, 2
        %v423 = vsel %vm412, %v420, %v422
        %424 = vrot.lane.b32.xlu0 %v415, 20
        %v425 = vpop.permute.xlu0 %424
        %426 = vrot.lane.b32.xlu0 %v417, 20
        %v427 = vpop.permute.xlu0 %426
        %428 = vrot.lane.b32.xlu0 %v419, 20
        %v429 = vpop.permute.xlu0 %428
        %430 = vrot.lane.b32.xlu0 %v421, 20
        %v431 = vpop.permute.xlu0 %430
        %432 = vrot.lane.b32.xlu0 %v423, 20
        %v433 = vpop.permute.xlu0 %432
        %v435 = vunpack.c.l.b16 %v213
        %v436 = vpack.c.b16 %v320, %v240
        %v437 = vpack.c.b16 %v435, %v435
        %v438 = vrot.slane %v235, 2
        %v439 = vrot.slane %v236, 2
        %v440 = vsel %vm412, %v438, %v439
        %v441 = vrot.slane %v237, 2
        %v442 = vsel %vm412, %v439, %v441
        %v443 = vrot.slane %v238, 2
        %v444 = vsel %vm412, %v441, %v443
        %v445 = vrot.slane %v436, 2
        %v446 = vsel %vm412, %v443, %v445
        %v447 = vrot.slane %v437, 2
        %v448 = vsel %vm412, %v445, %v447
        %449 = vrot.lane.b32.xlu0 %v440, 24
        %v450 = vpop.permute.xlu0 %449
        %451 = vrot.lane.b32.xlu0 %v442, 24
        %v452 = vpop.permute.xlu0 %451
        %453 = vrot.lane.b32.xlu0 %v444, 24
        %v454 = vpop.permute.xlu0 %453
        %455 = vrot.lane.b32.xlu0 %v446, 24
        %v456 = vpop.permute.xlu0 %455
        %457 = vrot.lane.b32.xlu0 %v448, 24
        %v458 = vpop.permute.xlu0 %457
        %vm459 = vsmask.f32 5376
        %v460 = vrot.slane %v255, 2
        %v461 = vrot.slane %v251, 3
        %v462 = vor.u32 %v460, %v461
        %v463 = vrot.slane %v263, 2
        %v464 = vrot.slane %v259, 3
        %v465 = vor.u32 %v463, %v464
        %v466 = vsel %vm459, %v462, %v465
        %v467 = vrot.slane %v271, 2
        %v468 = vrot.slane %v267, 3
        %v469 = vor.u32 %v467, %v468
        %v470 = vsel %vm459, %v465, %v469
        %v471 = vrot.slane %v279, 2
        %v472 = vrot.slane %v275, 3
        %v473 = vor.u32 %v471, %v472
        %v474 = vsel %vm459, %v469, %v473
        %v476 = vshrl.u32 %v436, 16
        %v478 = vrot.slane %v476, 2
        %v479 = vshll.u32 %v436, 16
        %v481 = vrot.slane %v479, 3
        %v482 = vor.u32 %v478, %v481
        %v483 = vsel %vm459, %v473, %v482
        %v485 = vshrl.u32 %v437, 16
        %v487 = vrot.slane %v485, 2
        %v488 = vshll.u32 %v437, 16
        %v490 = vrot.slane %v488, 3
        %v491 = vor.u32 %v487, %v490
        %v492 = vsel %vm459, %v482, %v491
        %493 = vrot.lane.b32.xlu0 %v466, 28
        %v494 = vpop.permute.xlu0 %493
        %495 = vrot.lane.b32.xlu0 %v470, 28
        %v496 = vpop.permute.xlu0 %495
        %497 = vrot.lane.b32.xlu0 %v474, 28
        %v498 = vpop.permute.xlu0 %497
        %499 = vrot.lane.b32.xlu0 %v483, 28
        %v500 = vpop.permute.xlu0 %499
        %501 = vrot.lane.b32.xlu0 %v492, 28
        %v502 = vpop.permute.xlu0 %501
        %vm503 = vcmask 1044480
        %v504 = vrot.slane %v235, 3
        %v505 = vrot.slane %v236, 3
        %v506 = vsel %vm503, %v504, %v505
        %v507 = vrot.slane %v237, 3
        %v508 = vsel %vm503, %v505, %v507
        %v509 = vrot.slane %v238, 3
        %v510 = vsel %vm503, %v507, %v509
        %v511 = vrot.slane %v436, 3
        %v512 = vsel %vm503, %v509, %v511
        %v513 = vrot.slane %v437, 3
        %v514 = vsel %vm503, %v511, %v513
        %515 = vrot.lane.b32.xlu0 %v506, 32
        %v516 = vpop.permute.xlu0 %515
        %517 = vrot.lane.b32.xlu0 %v508, 32
        %v518 = vpop.permute.xlu0 %517
        %519 = vrot.lane.b32.xlu0 %v510, 32
        %v520 = vpop.permute.xlu0 %519
        %521 = vrot.lane.b32.xlu0 %v512, 32
        %v522 = vpop.permute.xlu0 %521
        %523 = vrot.lane.b32.xlu0 %v514, 32
        %v524 = vpop.permute.xlu0 %523
        %vm525 = vcmask 31744
        %v527 = vsel %vm525, %v234, %v288
        %v529 = vsel %vm525, %v235, %v290
        %v531 = vsel %vm525, %v236, %v292
        %v533 = vsel %vm525, %v237, %v294
        %v535 = vsel %vm525, %v238, %v296
        %vm536 = vcmask 64512
        %v538 = vsel %vm536, %v527, %v310
        %v540 = vsel %vm536, %v529, %v312
        %v542 = vsel %vm536, %v531, %v314
        %v544 = vsel %vm536, %v533, %v316
        %v546 = vsel %vm536, %v535, %v318
        %vm547 = vcmask 97280
        %v549 = vsel %vm547, %v538, %v339
        %v551 = vsel %vm547, %v540, %v341
        %v553 = vsel %vm547, %v542, %v343
        %v555 = vsel %vm547, %v544, %v345
        %v557 = vsel %vm547, %v546, %v347
        %vm558 = vcmask 130048
        %v560 = vsel %vm558, %v549, %v403
        %v562 = vsel %vm558, %v551, %v405
        %v564 = vsel %vm558, %v553, %v407
        %v566 = vsel %vm558, %v555, %v409
        %v568 = vsel %vm558, %v557, %v411
        %vm569 = vcmask 162816
        %v571 = vsel %vm569, %v560, %v425
        %v573 = vsel %vm569, %v562, %v427
        %v575 = vsel %vm569, %v564, %v429
        %v577 = vsel %vm569, %v566, %v431
        %v579 = vsel %vm569, %v568, %v433
        %vm580 = vcmask 195584
        %v582 = vsel %vm580, %v571, %v450
        %v584 = vsel %vm580, %v573, %v452
        %v586 = vsel %vm580, %v575, %v454
        %v588 = vsel %vm580, %v577, %v456
        %v590 = vsel %vm580, %v579, %v458
        %vm591 = vcmask 228352
        %v593 = vsel %vm591, %v582, %v494
        %v595 = vsel %vm591, %v584, %v496
        %v597 = vsel %vm591, %v586, %v498
        %v599 = vsel %vm591, %v588, %v500
        %v601 = vsel %vm591, %v590, %v502
        %vm602 = vcmask 261120
        %v604 = vsel %vm602, %v593, %v516
        %v606 = vsel %vm602, %v595, %v518
        %v608 = vsel %vm602, %v597, %v520
        %v610 = vsel %vm602, %v599, %v522
        %v612 = vsel %vm602, %v601, %v524
        %v618 = vunpack.c.l.b16 %v175
        %v619 = vunpack.c.l.b16 %v176
        %v620 = vunpack.c.l.b16 %v177
        %v621 = vunpack.c.l.b16 %v178
        %v622 = vunpack.c.l.b16 %v179
        %v623 = vpack.c.b16 %v619, %v618
        %v624 = vpack.c.b16 %v621, %v620
        %v625 = vpack.c.b16 %v622, %v622
        %vm628 = vcmask 293888
        %v629 = vsel %vm628, %v604, 0
        %v631 = vsel %vm628, %v606, 0
        %v633 = vsel %vm628, %v608, 0
        %v635 = vsel %vm628, %v610, 0
        %v637 = vsel %vm628, %v612, 0
        %vm639 = vcmask 1041408
        %v641 = vsel %vm639, %v625, 0
        %643 = vmatprep.subr.bf16.mxu0 0
        %644 = vmatpush1.bf16.msra.mxu0 0
        %645 = vmatprep.subr.bf16.mxu0 0
        %646 = vmatpush1.bf16.msra.mxu0 0
        %647 = vmatprep.subr.bf16.mxu0 0
        %648 = vmatpush1.bf16.msra.mxu0 0
        %649 = vmatprep.subr.bf16.mxu0 0
        %650 = vmatpush1.bf16.msra.mxu0 0
        %651 = vmatprep.subr.bf16.mxu0 0
        %652 = vmatpush1.bf16.msra.mxu0 0
        %653 = vmatprep.subr.bf16.mxu0 0
        %654 = vmatpush1.bf16.msra.mxu0 %v641
        %655 = vmatprep.subr.bf16.mxu0 0
        %656 = vmatpush1.bf16.msra.mxu0 %v624
        %657 = vmatprep.subr.bf16.mxu0 0
        %658 = vmatpush1.bf16.msra.mxu0 %v623
        %659 = vmatprep.subr.bf16.mxu0 0
        %660 = vmatpush2.bf16.msra.mxu0 0
        %661 = vmatprep.subr.bf16.mxu0 0
        %662 = vmatpush2.bf16.msra.mxu0 0
        %663 = vmatprep.subr.bf16.mxu0 0
        %664 = vmatpush2.bf16.msra.mxu0 0
        %665 = vmatprep.subr.bf16.mxu0 0
        %666 = vmatpush2.bf16.msra.mxu0 0
        %667 = vmatprep.subr.bf16.mxu0 0
        %668 = vmatpush2.bf16.msra.mxu0 0
        %669 = vmatprep.subr.bf16.mxu0 0
        %670 = vmatpush2.bf16.msra.mxu0 0
        %671 = vmatprep.subr.bf16.mxu0 0
        %672 = vmatpush2.bf16.msra.mxu0 0
        %673 = vmatprep.subr.bf16.mxu0 0
        %674 = vmatpush2.bf16.msra.mxu0 0
        %675 = vmatprep.mubr.bf16.mxu0 0
        %676 = vmatmul.mubr.bf16.gmra.mxu0 %v629
        %v677 = vpop.f32.mrf.mxu0
        %v678 = vadd.f32 0.0, %v677
        %v679 = vpop.f32.mrf.mxu0
        %v680 = vpop.f32.mrf.mxu0
        %v681 = vadd.f32 0.0, %v680
        %v682 = vpop.f32.mrf.mxu0
        %683 = vmatprep.mubr.bf16.mxu0 0
        %684 = vmatmul.mubr.bf16.gmra.mxu0 %v631
        %v685 = vpop.f32.mrf.mxu0
        %v686 = vadd.f32 0.0, %v685
        %v687 = vpop.f32.mrf.mxu0
        %v688 = vpop.f32.mrf.mxu0
        %v689 = vadd.f32 0.0, %v688
        %v690 = vpop.f32.mrf.mxu0
        %691 = vmatprep.mubr.bf16.mxu0 0
        %692 = vmatmul.mubr.bf16.gmra.mxu0 %v633
        %v693 = vpop.f32.mrf.mxu0
        %v694 = vadd.f32 0.0, %v693
        %v695 = vpop.f32.mrf.mxu0
        %v696 = vpop.f32.mrf.mxu0
        %v697 = vadd.f32 0.0, %v696
        %v698 = vpop.f32.mrf.mxu0
        %699 = vmatprep.mubr.bf16.mxu0 0
        %700 = vmatmul.mubr.bf16.gmra.mxu0 %v635
        %v701 = vpop.f32.mrf.mxu0
        %v702 = vadd.f32 0.0, %v701
        %v703 = vpop.f32.mrf.mxu0
        %v704 = vpop.f32.mrf.mxu0
        %v705 = vadd.f32 0.0, %v704
        %v706 = vpop.f32.mrf.mxu0
        %707 = vmatprep.mubr.bf16.mxu0 0
        %708 = vmatmul.mubr.bf16.gmra.mxu0 %v637
        %v709 = vpop.f32.mrf.mxu0
        %v710 = vadd.f32 0.0, %v709
        %v711 = vpop.f32.mrf.mxu0
        %v712 = vpop.f32.mrf.mxu0
        %v713 = vadd.f32 0.0, %v712
        %v714 = vpop.f32.mrf.mxu0
        %715 = vdwg.mxu0
        %717 = vset.pattern.permute.xlu0 0
        %718 = vperm.xlu0 %717, %v180
        %v719 = vpop.permute.xlu0 %718
        %722 = vset.pattern.permute.xlu0 0
        %723 = vperm.xlu0 %722, %v181
        %v724 = vpop.permute.xlu0 %723
        %727 = vset.pattern.permute.xlu0 0
        %728 = vperm.xlu0 %727, %v182
        %v729 = vpop.permute.xlu0 %728
        %732 = vset.pattern.permute.xlu0 0
        %733 = vperm.xlu0 %732, %v183
        %v734 = vpop.permute.xlu0 %733
        %737 = vset.pattern.permute.xlu0 0
        %738 = vperm.xlu0 %737, %v184
        %v739 = vpop.permute.xlu0 %738
        %742 = vset.pattern.permute.xlu0 0
        %743 = vperm.xlu0 %742, %v185
        %v744 = vpop.permute.xlu0 %743
        %747 = vset.pattern.permute.xlu0 0
        %748 = vperm.xlu0 %747, %v186
        %v749 = vpop.permute.xlu0 %748
        %752 = vset.pattern.permute.xlu0 0
        %753 = vperm.xlu0 %752, %v187
        %v754 = vpop.permute.xlu0 %753
        %757 = vset.pattern.permute.xlu0 0
        %758 = vperm.xlu0 %757, %v188
        %v759 = vpop.permute.xlu0 %758
        %762 = vset.pattern.permute.xlu0 0
        %763 = vperm.xlu0 %762, %v189
        %v764 = vpop.permute.xlu0 %763
        %v766 = vmul.f32 %v678, %v719
        %v767 = vmul.f32 %v681, %v724
        %v768 = vmul.f32 %v686, %v729
        %v769 = vmul.f32 %v689, %v734
        %v770 = vmul.f32 %v694, %v739
        %v771 = vmul.f32 %v697, %v744
        %v772 = vmul.f32 %v702, %v749
        %v773 = vmul.f32 %v705, %v754
        %v774 = vmul.f32 %v710, %v759
        %v775 = vmul.f32 %v713, %v764
        %v776 = vsel %vm602, %v766, 0.0
        %v777 = vsel %vm602, %v767, 0.0
        %v778 = vadd.f32 %v776, %v777
        %v779 = vsel %vm602, %v768, 0.0
        %v780 = vadd.f32 %v778, %v779
        %v781 = vsel %vm602, %v769, 0.0
        %v782 = vadd.f32 %v780, %v781
        %v783 = vsel %vm602, %v770, 0.0
        %v784 = vadd.f32 %v782, %v783
        %v785 = vsel %vm602, %v771, 0.0
        %v786 = vadd.f32 %v784, %v785
        %v787 = vsel %vm602, %v772, 0.0
        %v788 = vadd.f32 %v786, %v787
        %v789 = vsel %vm602, %v773, 0.0
        %v790 = vadd.f32 %v788, %v789
        %v791 = vsel %vm602, %v774, 0.0
        %v792 = vadd.f32 %v790, %v791
        %v793 = vsel %vm602, %v775, 0.0
        %v794 = vadd.f32 %v792, %v793
        %v795 = vrot.slane %v794, 4
        %v796 = vadd.f32 %v794, %v795
        %v797 = vrot.slane %v796, 2
        %v798 = vadd.f32 %v796, %v797
        %v799 = vrot.slane %v798, 1
        %v800 = vadd.f32 %v798, %v799
        %v801 = vadd.f32 %v196, %v800
        %v802 = vmul.f32 %v766, %v678
        %v803 = vmul.f32 %v767, %v681
        %v804 = vmul.f32 %v768, %v686
        %v805 = vmul.f32 %v769, %v689
        %v806 = vmul.f32 %v770, %v694
        %v807 = vmul.f32 %v771, %v697
        %v808 = vmul.f32 %v772, %v702
        %v809 = vmul.f32 %v773, %v705
        %v810 = vmul.f32 %v774, %v710
        %v811 = vmul.f32 %v775, %v713
        %v812 = vsel %vm602, %v802, 0.0
        %v813 = vsel %vm602, %v803, 0.0
        %v814 = vadd.f32 %v812, %v813
        %v815 = vsel %vm602, %v804, 0.0
        %v816 = vadd.f32 %v814, %v815
        %v817 = vsel %vm602, %v805, 0.0
        %v818 = vadd.f32 %v816, %v817
        %v819 = vsel %vm602, %v806, 0.0
        %v820 = vadd.f32 %v818, %v819
        %v821 = vsel %vm602, %v807, 0.0
        %v822 = vadd.f32 %v820, %v821
        %v823 = vsel %vm602, %v808, 0.0
        %v824 = vadd.f32 %v822, %v823
        %v825 = vsel %vm602, %v809, 0.0
        %v826 = vadd.f32 %v824, %v825
        %v827 = vsel %vm602, %v810, 0.0
        %v828 = vadd.f32 %v826, %v827
        %v829 = vsel %vm602, %v811, 0.0
        %v830 = vadd.f32 %v828, %v829
        %v831 = vrot.slane %v830, 4
        %v832 = vadd.f32 %v830, %v831
        %v833 = vrot.slane %v832, 2
        %v834 = vadd.f32 %v832, %v833
        %v835 = vrot.slane %v834, 1
        %v836 = vadd.f32 %v834, %v835
        %v837 = vadd.f32 %v197, %v836
      $region37: #{cbdr_3d_forward.2} parent=31 // loop_footer
        %s195 = sadd.s32 1, %s191
      $region38: #{cbdr_3d_forward.2} parent=31 // loop_footer_branch
        %190 = sbr.rel target = $region34
      $region39: #{cbdr_3d_forward.2} parent=31 // loop_exit
        _
      %vm838 = vcmask 1040384
      %v839 = vsel %vm838, %v196, %v197
      %vm840 = vcmask 254976
      %841 = vst.msk [vmem:[%s173] sm:$0x3] %vm840, %v839
      %p842 = scmp.lt.s32.totalorder %s14, 1
      %s843 = scalar_select %p842, %s14, 1
      %s844 = smul.addr %s843, 2
      %s845 = scalar_lea.vmem %s3, %s844
      // Predicated region
      $region40: #{cbdr_3d_forward.2} parent=31 // pred_check
        %p846 = pneg %p100
      $region41: #{cbdr_3d_forward.2} parent=31 // pred_check_branch
        %848 = sbr.rel (%p846) target = $region43
      $region42: #{cbdr_3d_forward.2} parent=31 // pred_region
        _
      $region43: #{cbdr_3d_forward.2} parent=31 // pred_fallthru
        _
    $region32: #{cbdr_3d_forward.2} parent=5 // pred_fallthru
      _
    %p849 = scmp.le.s32.totalorder 2, %s9
    // Predicated region
    $region44: #{cbdr_3d_forward.2} parent=5 // pred_check
      %p850 = pneg %p849
    $region45: #{cbdr_3d_forward.2} parent=5 // pred_check_branch
      %852 = sbr.rel (%p850) target = $region47
    $region46: #{cbdr_3d_forward.2} parent=5 // pred_region
      %s853 = ssub.s32 %s9, 2
      // Predicated region
      $region48: #{cbdr_3d_forward.2} parent=46 // pred_check
        %p854 = pneg %p106
      $region49: #{cbdr_3d_forward.2} parent=46 // pred_check_branch
        %856 = sbr.rel (%p854) target = $region51
      $region50: #{cbdr_3d_forward.2} parent=46 // pred_region
        %p857 = scmp.lt.s32.totalorder %s15, 1
        %s858 = scalar_select %p857, %s15, 1
        %s859 = smul.addr %s858, 2
        %s860 = scalar_lea.vmem %s3, %s859
      $region51: #{cbdr_3d_forward.2} parent=46 // pred_fallthru
        _
    $region47: #{cbdr_3d_forward.2} parent=5 // pred_fallthru
      _
  $region6: #{cbdr_3d_forward.2} parent=0 // loop_footer
    %s13 = sadd.s32 1, %s9
  $region7: #{cbdr_3d_forward.2} parent=0 // loop_footer_branch
    %8 = sbr.rel target = $region3
  $region8: #{cbdr_3d_forward.2} parent=0 // loop_exit
    _

</llo_original>
